<compile_context>
chip_gen: v7x
topology: tpu7x:2x2x1
jax: 0.10.0
libtpu: 0.0.40
codegen_flags: <defaults>
</compile_context>

<pallas_src>
import jax
import jax.numpy as jnp
from jax.experimental import pallas as pl
from jax.experimental.pallas import tpu as pltpu


def _round_up(x, m):
    return (x + m - 1) // m * m


def decoder_kernel(emb_ref, enc_ref, hid_ref,
                   attn_wh_ref, attn_we_ref, attn_b_ref, v_ref,
                   wih_e_ref, wih_w_ref, whh_ref, bih_ref, bhh_ref,
                   fc_w_ref, fc_b_ref,
                   pred_ref, newhid_ref,
                   xfc_ref):
    vj = pl.program_id(1)

    H = hid_ref.shape[1]
    E = emb_ref.shape[1]

    # Heavy per-batch-block work (attention + GRU) only on the first vocab tile;
    # the fused fc input is staged in VMEM scratch and reused for every tile.
    @pl.when(vj == 0)
    def _():
        emb = emb_ref[...]                       # (TB, E)
        hid = hid_ref[...]                       # (TB, H)
        enc = enc_ref[...]                       # (TB, S, 2*enc_hid)
        TB, S, ENC2 = enc.shape

        # ---------------- Attention ----------------
        # energy = tanh([hidden, enc] @ attn_W^T + b), with the weight pre-split.
        e_enc = jnp.dot(enc.reshape(TB * S, ENC2), attn_we_ref[...],
                        preferred_element_type=jnp.float32).reshape(TB, S, H)
        e_hid = jnp.dot(hid, attn_wh_ref[...],
                        preferred_element_type=jnp.float32)            # (TB, H)
        energy = jnp.tanh(e_enc + e_hid[:, None, :] + attn_b_ref[...])  # (TB, S, H)

        # scores with sequence on the lane axis: (TB, S)
        scores = jnp.sum(energy * v_ref[...][None], axis=2)
        scores = scores - jnp.max(scores, axis=1, keepdims=True)
        p = jnp.exp(scores)
        attn = p * pl.reciprocal(jnp.sum(p, axis=1, keepdims=True))     # (TB, S)

        # weighted = attn @ enc on the MXU (batched matmul)
        weighted = jnp.einsum('bqs,bse->bqe', attn[:, None, :], enc,
                              preferred_element_type=jnp.float32)[:, 0, :]  # (TB, ENC2)

        # ---------------- GRU cell (PyTorch gate order r, z, n) ----------------
        # rnn input x = concat([embedded, weighted]); per-gate, per-input matmuls
        # keep every gate result lane-aligned at lane 0.
        def gate_pre(g):
            gi = (jnp.dot(emb, wih_e_ref[g], preferred_element_type=jnp.float32)
                  + jnp.dot(weighted, wih_w_ref[g], preferred_element_type=jnp.float32)
                  + bih_ref[g])
            gh = (jnp.dot(hid, whh_ref[g], preferred_element_type=jnp.float32)
                  + bhh_ref[g])
            return gi, gh

        gi_r, gh_r = gate_pre(0)
        gi_z, gh_z = gate_pre(1)
        gi_n, gh_n = gate_pre(2)
        r = jax.nn.sigmoid(gi_r + gh_r)
        z = jax.nn.sigmoid(gi_z + gh_z)
        n = jnp.tanh(gi_n + r * gh_n)
        h_new = (1.0 - z) * n + z * hid                                  # (TB, H)

        newhid_ref[...] = h_new.astype(newhid_ref.dtype)

        # Stage fused fc input [h_new, emb, weighted] in VMEM scratch.
        xfc_ref[:, 0:H] = h_new
        xfc_ref[:, H:H + E] = emb
        xfc_ref[:, H + E:] = weighted

    # ---------------- fc_out (one fused matmul per lane-dense vocab tile) ----
    pred_ref[...] = (jnp.dot(xfc_ref[...], fc_w_ref[...],
                             preferred_element_type=jnp.float32)
                     + fc_b_ref[...]).astype(pred_ref.dtype)


def prepare_params(params, v_tile=512):
    """One-time weight prep (transpose to (in, out), split per gate, pad V)."""
    H = params["w_hh"].shape[1]                 # dec_hid
    E = params["embedding"].shape[1]
    enc2 = params["attn_w"].shape[1] - H        # 2 * enc_hid
    V = params["fc_b"].shape[0]

    V_TILE = min(v_tile, _round_up(V, 128))
    Vpad = _round_up(V, V_TILE)

    attn_w = params["attn_w"]                   # (H, H + enc2), cat order [hidden, enc]
    w_ih = params["w_ih"].reshape(3, H, E + enc2)   # gate order r, z, n
    w_hh = params["w_hh"].reshape(3, H, H)
    fc_wT = params["fc_w"].T                    # (H + E + enc2, V)

    prep = {
        "embedding": params["embedding"],
        "attn_wh": attn_w[:, :H].T,                              # (H, H)
        "attn_we": attn_w[:, H:].T,                              # (enc2, H)
        "attn_b": params["attn_b"][None, :],                     # (1, H)
        "v_w": params["v_w"],                                    # (1, H)
        "wih_e": jnp.transpose(w_ih[:, :, :E], (0, 2, 1)),       # (3, E, H)
        "wih_w": jnp.transpose(w_ih[:, :, E:], (0, 2, 1)),       # (3, enc2, H)
        "whh": jnp.transpose(w_hh, (0, 2, 1)),                   # (3, H, H)
        "bih": params["b_ih"].reshape(3, 1, H),
        "bhh": params["b_hh"].reshape(3, 1, H),
        "fc_w": jnp.pad(fc_wT, ((0, 0), (0, Vpad - V))),         # (H+E+enc2, Vpad)
        "fc_b": jnp.pad(params["fc_b"], (0, Vpad - V))[None, :],  # (1, Vpad)
    }
    meta = {"H": H, "E": E, "enc2": enc2, "V": V, "Vpad": Vpad, "V_TILE": V_TILE}
    return prep, meta


def decoder_forward(X, encoder_outputs, hidden, prep, meta, tile_b=128):
    """Mirrors Decoder.forward: returns (prediction (B, V), dec_hidden (B, H))."""
    B, S, enc2 = encoder_outputs.shape
    H, E, V = meta["H"], meta["E"], meta["V"]
    Vpad, V_TILE = meta["Vpad"], meta["V_TILE"]
    K = H + E + enc2

    TILE_B = min(tile_b, _round_up(B, 8))
    Bpad = _round_up(B, TILE_B)

    # glue: embedding lookup (gather); dropout = identity (eval mode)
    embedded = jnp.take(prep["embedding"], X, axis=0)            # (B, E)
    pad_b = Bpad - B
    if pad_b:
        embedded = jnp.pad(embedded, ((0, pad_b), (0, 0)))
        encoder_outputs = jnp.pad(encoder_outputs, ((0, pad_b), (0, 0), (0, 0)))
        hidden = jnp.pad(hidden, ((0, pad_b), (0, 0)))

    num_b = Bpad // TILE_B
    num_v = Vpad // V_TILE

    def w2(shape):
        return pl.BlockSpec(shape, lambda bi, vj: (0, 0))

    def w3(shape):
        return pl.BlockSpec(shape, lambda bi, vj: (0, 0, 0))

    grid_spec = pltpu.PrefetchScalarGridSpec(
        num_scalar_prefetch=0,
        grid=(num_b, num_v),
        in_specs=[
            pl.BlockSpec((TILE_B, E), lambda bi, vj: (bi, 0)),
            pl.BlockSpec((TILE_B, S, enc2), lambda bi, vj: (bi, 0, 0)),
            pl.BlockSpec((TILE_B, H), lambda bi, vj: (bi, 0)),
            w2((H, H)), w2((enc2, H)), w2((1, H)), w2((1, H)),
            w3((3, E, H)), w3((3, enc2, H)), w3((3, H, H)),
            w3((3, 1, H)), w3((3, 1, H)),
            pl.BlockSpec((K, V_TILE), lambda bi, vj: (0, vj)),
            pl.BlockSpec((1, V_TILE), lambda bi, vj: (0, vj)),
        ],
        out_specs=[
            pl.BlockSpec((TILE_B, V_TILE), lambda bi, vj: (bi, vj)),
            pl.BlockSpec((TILE_B, H), lambda bi, vj: (bi, 0)),
        ],
        scratch_shapes=[pltpu.VMEM((TILE_B, K), jnp.float32)],
    )

    pred_pad, newhid_pad = pl.pallas_call(
        decoder_kernel,
        out_shape=(jax.ShapeDtypeStruct((Bpad, Vpad), jnp.float32),
                   jax.ShapeDtypeStruct((Bpad, H), jnp.float32)),
        grid_spec=grid_spec,
        compiler_params=pltpu.CompilerParams(
            dimension_semantics=("parallel", "arbitrary"),
            vmem_limit_bytes=64 * 1024 * 1024),
    )(embedded, encoder_outputs, hidden,
      prep["attn_wh"], prep["attn_we"], prep["attn_b"], prep["v_w"],
      prep["wih_e"], prep["wih_w"], prep["whh"], prep["bih"], prep["bhh"],
      prep["fc_w"], prep["fc_b"])

    return pred_pad[:B, :V], newhid_pad[:B, :H]


def decoder_reference(X, enc, hid, params):
    """Pure-JAX re-implementation of the PyTorch forward (eval mode)."""
    embedded = params["embedding"][X]                            # (B, E)
    B, S, enc2 = enc.shape
    H = hid.shape[1]
    hrep = jnp.repeat(hid[:, None, :], S, axis=1)                # (B, S, H)
    cat = jnp.concatenate([hrep, enc], axis=2)                   # (B, S, H+enc2)
    energy = jnp.tanh(cat @ params["attn_w"].T + params["attn_b"])
    scores = (energy @ params["v_w"].T)[..., 0]                  # (B, S)
    a = jax.nn.softmax(scores, axis=1)
    weighted = jnp.einsum("bs,bse->be", a, enc)                  # (B, enc2)
    x = jnp.concatenate([embedded, weighted], axis=1)
    gi = x @ params["w_ih"].T + params["b_ih"]
    gh = hid @ params["w_hh"].T + params["b_hh"]
    r = jax.nn.sigmoid(gi[:, :H] + gh[:, :H])
    z = jax.nn.sigmoid(gi[:, H:2 * H] + gh[:, H:2 * H])
    n = jnp.tanh(gi[:, 2 * H:] + r * gh[:, 2 * H:])
    h_new = (1.0 - z) * n + z * hid
    fcin = jnp.concatenate([h_new, embedded, weighted], axis=1)
    pred = fcin @ params["fc_w"].T + params["fc_b"]
    return pred, h_new


def make_params(key, word_num, emb, enc_hid, dec_hid):
    enc2 = 2 * enc_hid
    rnn_in = enc2 + emb
    fc_in = dec_hid + enc2 + emb
    ks = jax.random.split(key, 10)
    s = 0.1
    return {
        "embedding": jax.random.normal(ks[0], (word_num, emb), jnp.float32) * s,
        "attn_w":    jax.random.normal(ks[1], (dec_hid, enc2 + dec_hid), jnp.float32) * s,
        "attn_b":    jax.random.normal(ks[2], (dec_hid,), jnp.float32) * s,
        "v_w":       jax.random.normal(ks[3], (1, dec_hid), jnp.float32) * s,
        "w_ih":      jax.random.normal(ks[4], (3 * dec_hid, rnn_in), jnp.float32) * s,
        "w_hh":      jax.random.normal(ks[5], (3 * dec_hid, dec_hid), jnp.float32) * s,
        "b_ih":      jax.random.normal(ks[6], (3 * dec_hid,), jnp.float32) * s,
        "b_hh":      jax.random.normal(ks[7], (3 * dec_hid,), jnp.float32) * s,
        "fc_w":      jax.random.normal(ks[8], (word_num, fc_in), jnp.float32) * s,
        "fc_b":      jax.random.normal(ks[9], (word_num,), jnp.float32) * s,
    }


if __name__ == "__main__":
    # small shapes: word_num=64, embedding=16, enc_hid=16 (enc outputs 32-wide),
    # dec_hid=32, batch=2, seq=8
    WORD_NUM, EMB, ENC_HID, DEC_HID = 64, 16, 16, 32
    B, S = 2, 8

    key = jax.random.PRNGKey(0)
    kp, kx, ke, kh = jax.random.split(key, 4)
    params = make_params(kp, WORD_NUM, EMB, ENC_HID, DEC_HID)
    prep, meta = prepare_params(params)          # one-time weight prep

    X = jax.random.randint(kx, (B,), 0, WORD_NUM, dtype=jnp.int32)
    encoder_outputs = jax.random.normal(ke, (B, S, 2 * ENC_HID), jnp.float32)
    hidden = jax.random.normal(kh, (B, DEC_HID), jnp.float32)

    pred, dec_hidden = decoder_forward(X, encoder_outputs, hidden, prep, meta)
    pred = jax.block_until_ready(pred)
    dec_hidden = jax.block_until_ready(dec_hidden)

    # sanity check against pure-JAX reference of the PyTorch forward
    pred_ref, hid_ref = decoder_reference(X, encoder_outputs, hidden, params)
    assert pred.shape == (B, WORD_NUM) and dec_hidden.shape == (B, DEC_HID)
    assert jnp.allclose(pred, pred_ref, rtol=1e-4, atol=1e-4)
    assert jnp.allclose(dec_hidden, hid_ref, rtol=1e-4, atol=1e-4)

    print("KERNEL_OK")
</pallas_src>

<mosaic_0001>
module attributes {stable_mosaic.version = 11 : i64} {
  func.func @decoder_kernel(%arg0: i32, %arg1: i32, %arg2: memref<8x16xf32, #tpu.memory_space<vmem>>, %arg3: memref<8x8x32xf32, #tpu.memory_space<vmem>>, %arg4: memref<8x32xf32, #tpu.memory_space<vmem>>, %arg5: memref<32x32xf32, #tpu.memory_space<vmem>>, %arg6: memref<32x32xf32, #tpu.memory_space<vmem>>, %arg7: memref<1x32xf32, #tpu.memory_space<vmem>>, %arg8: memref<1x32xf32, #tpu.memory_space<vmem>>, %arg9: memref<3x16x32xf32, #tpu.memory_space<vmem>>, %arg10: memref<3x32x32xf32, #tpu.memory_space<vmem>>, %arg11: memref<3x32x32xf32, #tpu.memory_space<vmem>>, %arg12: memref<3x1x32xf32, #tpu.memory_space<vmem>>, %arg13: memref<3x1x32xf32, #tpu.memory_space<vmem>>, %arg14: memref<80x128xf32, #tpu.memory_space<vmem>>, %arg15: memref<1x128xf32, #tpu.memory_space<vmem>>, %arg16: memref<8x128xf32, #tpu.memory_space<vmem>>, %arg17: memref<8x32xf32, #tpu.memory_space<vmem>>, %arg18: memref<8x80xf32, #tpu.memory_space<vmem>>) attributes {dimension_semantics = [#tpu.dimension_semantics<parallel>, #tpu.dimension_semantics<arbitrary>], iteration_bounds = array<i64: 1, 1>, scalar_prefetch = 0 : i64, scratch_operands = 1 : i64, tpu.core_type = #tpu.core_type<tc>, window_params = [{transform_indices = @transform_0, window_bounds = array<i64: 8, 16>}, {transform_indices = @transform_1, window_bounds = array<i64: 8, 8, 32>}, {transform_indices = @transform_2, window_bounds = array<i64: 8, 32>}, {pipeline_mode = #tpu.pipeline_mode<synchronous>, transform_indices = @transform_3, window_bounds = array<i64: 32, 32>}, {pipeline_mode = #tpu.pipeline_mode<synchronous>, transform_indices = @transform_4, window_bounds = array<i64: 32, 32>}, {pipeline_mode = #tpu.pipeline_mode<synchronous>, transform_indices = @transform_5, window_bounds = array<i64: 1, 32>}, {pipeline_mode = #tpu.pipeline_mode<synchronous>, transform_indices = @transform_6, window_bounds = array<i64: 1, 32>}, {pipeline_mode = #tpu.pipeline_mode<synchronous>, transform_indices = @transform_7, window_bounds = array<i64: 3, 16, 32>}, {pipeline_mode = #tpu.pipeline_mode<synchronous>, transform_indices = @transform_8, window_bounds = array<i64: 3, 32, 32>}, {pipeline_mode = #tpu.pipeline_mode<synchronous>, transform_indices = @transform_9, window_bounds = array<i64: 3, 32, 32>}, {pipeline_mode = #tpu.pipeline_mode<synchronous>, transform_indices = @transform_10, window_bounds = array<i64: 3, 1, 32>}, {pipeline_mode = #tpu.pipeline_mode<synchronous>, transform_indices = @transform_11, window_bounds = array<i64: 3, 1, 32>}, {transform_indices = @transform_12, window_bounds = array<i64: 80, 128>}, {transform_indices = @transform_13, window_bounds = array<i64: 1, 128>}, {transform_indices = @transform_14, window_bounds = array<i64: 8, 128>}, {transform_indices = @transform_15, window_bounds = array<i64: 8, 32>}]} {
    %c0_i32 = arith.constant 0 : i32
    %0 = arith.cmpi eq, %arg1, %c0_i32 : i32
    %1 = arith.extui %0 : i1 to i32
    %c0_i32_0 = arith.constant 0 : i32
    %2 = arith.cmpi ne, %1, %c0_i32_0 : i32
    scf.if %2 {
      %c0_8 = arith.constant 0 : index
      %c0_9 = arith.constant 0 : index
      %10 = vector.load %arg2[%c0_8, %c0_9] : memref<8x16xf32, #tpu.memory_space<vmem>>, vector<8x16xf32>
      %c0_10 = arith.constant 0 : index
      %c0_11 = arith.constant 0 : index
      %11 = vector.load %arg4[%c0_10, %c0_11] : memref<8x32xf32, #tpu.memory_space<vmem>>, vector<8x32xf32>
      %c0_12 = arith.constant 0 : index
      %c0_13 = arith.constant 0 : index
      %c0_14 = arith.constant 0 : index
      %12 = vector.load %arg3[%c0_12, %c0_13, %c0_14] : memref<8x8x32xf32, #tpu.memory_space<vmem>>, vector<8x8x32xf32>
      %13 = vector.shape_cast %12 : vector<8x8x32xf32> to vector<64x32xf32>
      %c0_15 = arith.constant 0 : index
      %c0_16 = arith.constant 0 : index
      %14 = vector.load %arg6[%c0_15, %c0_16] : memref<32x32xf32, #tpu.memory_space<vmem>>, vector<32x32xf32>
      %cst_17 = arith.constant dense<0.000000e+00> : vector<64x32xf32>
      %15 = tpu.matmul %13, %14, %cst_17 {dimension_numbers = #tpu.dot_dimension_numbers<[1], [0], [0], [1], [0, 0, 1, 1], [], []>} : vector<64x32xf32>, vector<32x32xf32>, vector<64x32xf32> -> vector<64x32xf32>
      %16 = vector.shape_cast %15 : vector<64x32xf32> to vector<8x8x32xf32>
      %c0_18 = arith.constant 0 : index
      %c0_19 = arith.constant 0 : index
      %17 = vector.load %arg5[%c0_18, %c0_19] : memref<32x32xf32, #tpu.memory_space<vmem>>, vector<32x32xf32>
      %cst_20 = arith.constant dense<0.000000e+00> : vector<8x32xf32>
      %18 = tpu.matmul %11, %17, %cst_20 {dimension_numbers = #tpu.dot_dimension_numbers<[1], [0], [0], [1], [0, 0, 1, 1], [], []>} : vector<8x32xf32>, vector<32x32xf32>, vector<8x32xf32> -> vector<8x32xf32>
      %19 = vector.shape_cast %18 : vector<8x32xf32> to vector<8x1x32xf32>
      %20 = vector.broadcast %19 : vector<8x1x32xf32> to vector<8x8x32xf32>
      %21 = arith.addf %16, %20 : vector<8x8x32xf32>
      %c0_21 = arith.constant 0 : index
      %c0_22 = arith.constant 0 : index
      %22 = vector.load %arg7[%c0_21, %c0_22] : memref<1x32xf32, #tpu.memory_space<vmem>>, vector<1x32xf32>
      %23 = vector.shape_cast %22 : vector<1x32xf32> to vector<1x1x32xf32>
      %24 = vector.broadcast %23 : vector<1x1x32xf32> to vector<8x8x32xf32>
      %25 = arith.addf %21, %24 : vector<8x8x32xf32>
      %26 = math.tanh %25 : vector<8x8x32xf32>
      %c0_23 = arith.constant 0 : index
      %c0_24 = arith.constant 0 : index
      %27 = vector.load %arg8[%c0_23, %c0_24] : memref<1x32xf32, #tpu.memory_space<vmem>>, vector<1x32xf32>
      %28 = vector.shape_cast %27 : vector<1x32xf32> to vector<1x1x32xf32>
      %29 = vector.broadcast %28 : vector<1x1x32xf32> to vector<8x8x32xf32>
      %30 = arith.mulf %26, %29 : vector<8x8x32xf32>
      %cst_25 = arith.constant dense<0.000000e+00> : vector<8x8xf32>
      %31 = vector.multi_reduction <add>, %30, %cst_25 [2] : vector<8x8x32xf32> to vector<8x8xf32>
      %cst_26 = arith.constant dense<0xFF800000> : vector<8xf32>
      %32 = vector.multi_reduction <maximumf>, %31, %cst_26 [1] : vector<8x8xf32> to vector<8xf32>
      %33 = vector.shape_cast %32 : vector<8xf32> to vector<8x1xf32>
      %34 = vector.broadcast %33 : vector<8x1xf32> to vector<8x8xf32>
      %35 = arith.subf %31, %34 : vector<8x8xf32>
      %36 = math.exp %35 : vector<8x8xf32>
      %cst_27 = arith.constant dense<0.000000e+00> : vector<8xf32>
      %37 = vector.multi_reduction <add>, %36, %cst_27 [1] : vector<8x8xf32> to vector<8xf32>
      %38 = vector.shape_cast %37 : vector<8xf32> to vector<8x1xf32>
      %39 = tpu.reciprocal %38 : vector<8x1xf32> -> vector<8x1xf32>
      %40 = vector.broadcast %39 : vector<8x1xf32> to vector<8x8xf32>
      %41 = arith.mulf %36, %40 : vector<8x8xf32>
      %42 = vector.shape_cast %41 : vector<8x8xf32> to vector<8x1x8xf32>
      "tpu.trace_start"() <{level = 10 : i32, message = "bqs,bse->bqe"}> : () -> ()
      %cst_28 = arith.constant dense<0.000000e+00> : vector<8x1x32xf32>
      %43 = tpu.matmul %42, %12, %cst_28 {dimension_numbers = #tpu.dot_dimension_numbers<[2], [1], [1], [2], [0, 0, 0, 1, 1, 2], [0], [0]>} : vector<8x1x8xf32>, vector<8x8x32xf32>, vector<8x1x32xf32> -> vector<8x1x32xf32>
      "tpu.trace_stop"() : () -> ()
      %44 = vector.shape_cast %43 : vector<8x1x32xf32> to vector<8x32xf32>
      %c0_29 = arith.constant 0 : index
      %c0_30 = arith.constant 0 : index
      %c0_31 = arith.constant 0 : index
      %45 = vector.load %arg9[%c0_29, %c0_30, %c0_31] : memref<3x16x32xf32, #tpu.memory_space<vmem>>, vector<1x16x32xf32>
      %46 = vector.shape_cast %45 : vector<1x16x32xf32> to vector<16x32xf32>
      %cst_32 = arith.constant dense<0.000000e+00> : vector<8x32xf32>
      %47 = tpu.matmul %10, %46, %cst_32 {dimension_numbers = #tpu.dot_dimension_numbers<[1], [0], [0], [1], [0, 0, 1, 1], [], []>} : vector<8x16xf32>, vector<16x32xf32>, vector<8x32xf32> -> vector<8x32xf32>
      %c0_33 = arith.constant 0 : index
      %c0_34 = arith.constant 0 : index
      %c0_35 = arith.constant 0 : index
      %48 = vector.load %arg10[%c0_33, %c0_34, %c0_35] : memref<3x32x32xf32, #tpu.memory_space<vmem>>, vector<1x32x32xf32>
      %49 = vector.shape_cast %48 : vector<1x32x32xf32> to vector<32x32xf32>
      %cst_36 = arith.constant dense<0.000000e+00> : vector<8x32xf32>
      %50 = tpu.matmul %44, %49, %cst_36 {dimension_numbers = #tpu.dot_dimension_numbers<[1], [0], [0], [1], [0, 0, 1, 1], [], []>} : vector<8x32xf32>, vector<32x32xf32>, vector<8x32xf32> -> vector<8x32xf32>
      %51 = arith.addf %47, %50 : vector<8x32xf32>
      %c0_37 = arith.constant 0 : index
      %c0_38 = arith.constant 0 : index
      %c0_39 = arith.constant 0 : index
      %52 = vector.load %arg12[%c0_37, %c0_38, %c0_39] : memref<3x1x32xf32, #tpu.memory_space<vmem>>, vector<1x1x32xf32>
      %53 = vector.shape_cast %52 : vector<1x1x32xf32> to vector<1x32xf32>
      %54 = vector.broadcast %53 : vector<1x32xf32> to vector<8x32xf32>
      %55 = arith.addf %51, %54 : vector<8x32xf32>
      %c0_40 = arith.constant 0 : index
      %c0_41 = arith.constant 0 : index
      %c0_42 = arith.constant 0 : index
      %56 = vector.load %arg11[%c0_40, %c0_41, %c0_42] : memref<3x32x32xf32, #tpu.memory_space<vmem>>, vector<1x32x32xf32>
      %57 = vector.shape_cast %56 : vector<1x32x32xf32> to vector<32x32xf32>
      %cst_43 = arith.constant dense<0.000000e+00> : vector<8x32xf32>
      %58 = tpu.matmul %11, %57, %cst_43 {dimension_numbers = #tpu.dot_dimension_numbers<[1], [0], [0], [1], [0, 0, 1, 1], [], []>} : vector<8x32xf32>, vector<32x32xf32>, vector<8x32xf32> -> vector<8x32xf32>
      %c0_44 = arith.constant 0 : index
      %c0_45 = arith.constant 0 : index
      %c0_46 = arith.constant 0 : index
      %59 = vector.load %arg13[%c0_44, %c0_45, %c0_46] : memref<3x1x32xf32, #tpu.memory_space<vmem>>, vector<1x1x32xf32>
      %60 = vector.shape_cast %59 : vector<1x1x32xf32> to vector<1x32xf32>
      %61 = vector.broadcast %60 : vector<1x32xf32> to vector<8x32xf32>
      %62 = arith.addf %58, %61 : vector<8x32xf32>
      %c1 = arith.constant 1 : index
      %c0_47 = arith.constant 0 : index
      %c0_48 = arith.constant 0 : index
      %63 = vector.load %arg9[%c1, %c0_47, %c0_48] : memref<3x16x32xf32, #tpu.memory_space<vmem>>, vector<1x16x32xf32>
      %64 = vector.shape_cast %63 : vector<1x16x32xf32> to vector<16x32xf32>
      %cst_49 = arith.constant dense<0.000000e+00> : vector<8x32xf32>
      %65 = tpu.matmul %10, %64, %cst_49 {dimension_numbers = #tpu.dot_dimension_numbers<[1], [0], [0], [1], [0, 0, 1, 1], [], []>} : vector<8x16xf32>, vector<16x32xf32>, vector<8x32xf32> -> vector<8x32xf32>
      %c1_50 = arith.constant 1 : index
      %c0_51 = arith.constant 0 : index
      %c0_52 = arith.constant 0 : index
      %66 = vector.load %arg10[%c1_50, %c0_51, %c0_52] : memref<3x32x32xf32, #tpu.memory_space<vmem>>, vector<1x32x32xf32>
      %67 = vector.shape_cast %66 : vector<1x32x32xf32> to vector<32x32xf32>
      %cst_53 = arith.constant dense<0.000000e+00> : vector<8x32xf32>
      %68 = tpu.matmul %44, %67, %cst_53 {dimension_numbers = #tpu.dot_dimension_numbers<[1], [0], [0], [1], [0, 0, 1, 1], [], []>} : vector<8x32xf32>, vector<32x32xf32>, vector<8x32xf32> -> vector<8x32xf32>
      %69 = arith.addf %65, %68 : vector<8x32xf32>
      %c1_54 = arith.constant 1 : index
      %c0_55 = arith.constant 0 : index
      %c0_56 = arith.constant 0 : index
      %70 = vector.load %arg12[%c1_54, %c0_55, %c0_56] : memref<3x1x32xf32, #tpu.memory_space<vmem>>, vector<1x1x32xf32>
      %71 = vector.shape_cast %70 : vector<1x1x32xf32> to vector<1x32xf32>
      %72 = vector.broadcast %71 : vector<1x32xf32> to vector<8x32xf32>
      %73 = arith.addf %69, %72 : vector<8x32xf32>
      %c1_57 = arith.constant 1 : index
      %c0_58 = arith.constant 0 : index
      %c0_59 = arith.constant 0 : index
      %74 = vector.load %arg11[%c1_57, %c0_58, %c0_59] : memref<3x32x32xf32, #tpu.memory_space<vmem>>, vector<1x32x32xf32>
      %75 = vector.shape_cast %74 : vector<1x32x32xf32> to vector<32x32xf32>
      %cst_60 = arith.constant dense<0.000000e+00> : vector<8x32xf32>
      %76 = tpu.matmul %11, %75, %cst_60 {dimension_numbers = #tpu.dot_dimension_numbers<[1], [0], [0], [1], [0, 0, 1, 1], [], []>} : vector<8x32xf32>, vector<32x32xf32>, vector<8x32xf32> -> vector<8x32xf32>
      %c1_61 = arith.constant 1 : index
      %c0_62 = arith.constant 0 : index
      %c0_63 = arith.constant 0 : index
      %77 = vector.load %arg13[%c1_61, %c0_62, %c0_63] : memref<3x1x32xf32, #tpu.memory_space<vmem>>, vector<1x1x32xf32>
      %78 = vector.shape_cast %77 : vector<1x1x32xf32> to vector<1x32xf32>
      %79 = vector.broadcast %78 : vector<1x32xf32> to vector<8x32xf32>
      %80 = arith.addf %76, %79 : vector<8x32xf32>
      %c2 = arith.constant 2 : index
      %c0_64 = arith.constant 0 : index
      %c0_65 = arith.constant 0 : index
      %81 = vector.load %arg9[%c2, %c0_64, %c0_65] : memref<3x16x32xf32, #tpu.memory_space<vmem>>, vector<1x16x32xf32>
      %82 = vector.shape_cast %81 : vector<1x16x32xf32> to vector<16x32xf32>
      %cst_66 = arith.constant dense<0.000000e+00> : vector<8x32xf32>
      %83 = tpu.matmul %10, %82, %cst_66 {dimension_numbers = #tpu.dot_dimension_numbers<[1], [0], [0], [1], [0, 0, 1, 1], [], []>} : vector<8x16xf32>, vector<16x32xf32>, vector<8x32xf32> -> vector<8x32xf32>
      %c2_67 = arith.constant 2 : index
      %c0_68 = arith.constant 0 : index
      %c0_69 = arith.constant 0 : index
      %84 = vector.load %arg10[%c2_67, %c0_68, %c0_69] : memref<3x32x32xf32, #tpu.memory_space<vmem>>, vector<1x32x32xf32>
      %85 = vector.shape_cast %84 : vector<1x32x32xf32> to vector<32x32xf32>
      %cst_70 = arith.constant dense<0.000000e+00> : vector<8x32xf32>
      %86 = tpu.matmul %44, %85, %cst_70 {dimension_numbers = #tpu.dot_dimension_numbers<[1], [0], [0], [1], [0, 0, 1, 1], [], []>} : vector<8x32xf32>, vector<32x32xf32>, vector<8x32xf32> -> vector<8x32xf32>
      %87 = arith.addf %83, %86 : vector<8x32xf32>
      %c2_71 = arith.constant 2 : index
      %c0_72 = arith.constant 0 : index
      %c0_73 = arith.constant 0 : index
      %88 = vector.load %arg12[%c2_71, %c0_72, %c0_73] : memref<3x1x32xf32, #tpu.memory_space<vmem>>, vector<1x1x32xf32>
      %89 = vector.shape_cast %88 : vector<1x1x32xf32> to vector<1x32xf32>
      %90 = vector.broadcast %89 : vector<1x32xf32> to vector<8x32xf32>
      %91 = arith.addf %87, %90 : vector<8x32xf32>
      %c2_74 = arith.constant 2 : index
      %c0_75 = arith.constant 0 : index
      %c0_76 = arith.constant 0 : index
      %92 = vector.load %arg11[%c2_74, %c0_75, %c0_76] : memref<3x32x32xf32, #tpu.memory_space<vmem>>, vector<1x32x32xf32>
      %93 = vector.shape_cast %92 : vector<1x32x32xf32> to vector<32x32xf32>
      %cst_77 = arith.constant dense<0.000000e+00> : vector<8x32xf32>
      %94 = tpu.matmul %11, %93, %cst_77 {dimension_numbers = #tpu.dot_dimension_numbers<[1], [0], [0], [1], [0, 0, 1, 1], [], []>} : vector<8x32xf32>, vector<32x32xf32>, vector<8x32xf32> -> vector<8x32xf32>
      %c2_78 = arith.constant 2 : index
      %c0_79 = arith.constant 0 : index
      %c0_80 = arith.constant 0 : index
      %95 = vector.load %arg13[%c2_78, %c0_79, %c0_80] : memref<3x1x32xf32, #tpu.memory_space<vmem>>, vector<1x1x32xf32>
      %96 = vector.shape_cast %95 : vector<1x1x32xf32> to vector<1x32xf32>
      %97 = vector.broadcast %96 : vector<1x32xf32> to vector<8x32xf32>
      %98 = arith.addf %94, %97 : vector<8x32xf32>
      %99 = arith.addf %55, %62 : vector<8x32xf32>
      %100 = arith.negf %99 : vector<8x32xf32>
      %101 = math.exp %100 : vector<8x32xf32>
      %cst_81 = arith.constant 1.000000e+00 : f32
      %102 = vector.broadcast %cst_81 : f32 to vector<8x32xf32>
      %103 = arith.addf %102, %101 : vector<8x32xf32>
      %104 = arith.divf %102, %103 : vector<8x32xf32>
      %105 = arith.addf %73, %80 : vector<8x32xf32>
      %106 = arith.negf %105 : vector<8x32xf32>
      %107 = math.exp %106 : vector<8x32xf32>
      %cst_82 = arith.constant 1.000000e+00 : f32
      %108 = vector.broadcast %cst_82 : f32 to vector<8x32xf32>
      %109 = arith.addf %108, %107 : vector<8x32xf32>
      %110 = arith.divf %108, %109 : vector<8x32xf32>
      %111 = arith.mulf %104, %98 : vector<8x32xf32>
      %112 = arith.addf %91, %111 : vector<8x32xf32>
      %113 = math.tanh %112 : vector<8x32xf32>
      %cst_83 = arith.constant 1.000000e+00 : f32
      %114 = vector.broadcast %cst_83 : f32 to vector<8x32xf32>
      %115 = arith.subf %114, %110 : vector<8x32xf32>
      %116 = arith.mulf %115, %113 : vector<8x32xf32>
      %117 = arith.mulf %110, %11 : vector<8x32xf32>
      %118 = arith.addf %116, %117 : vector<8x32xf32>
      %c0_84 = arith.constant 0 : index
      %c0_85 = arith.constant 0 : index
      %119 = vector.load %arg17[%c0_84, %c0_85] : memref<8x32xf32, #tpu.memory_space<vmem>>, vector<8x32xf32>
      tpu.vector_store %arg17[%c0_84, %c0_85], %118 {strides = array<i32>} : memref<8x32xf32, #tpu.memory_space<vmem>>, vector<8x32xf32>,
      %c0_86 = arith.constant 0 : index
      %c0_87 = arith.constant 0 : index
      %120 = vector.load %arg18[%c0_86, %c0_87] : memref<8x80xf32, #tpu.memory_space<vmem>>, vector<8x32xf32>
      tpu.vector_store %arg18[%c0_86, %c0_87], %118 {strides = array<i32>} : memref<8x80xf32, #tpu.memory_space<vmem>>, vector<8x32xf32>,
      %c0_88 = arith.constant 0 : index
      %c32 = arith.constant 32 : index
      %121 = vector.load %arg18[%c0_88, %c32] : memref<8x80xf32, #tpu.memory_space<vmem>>, vector<8x16xf32>
      tpu.vector_store %arg18[%c0_88, %c32], %10 {strides = array<i32>} : memref<8x80xf32, #tpu.memory_space<vmem>>, vector<8x16xf32>,
      %c0_89 = arith.constant 0 : index
      %c48 = arith.constant 48 : index
      %122 = vector.load %arg18[%c0_89, %c48] : memref<8x80xf32, #tpu.memory_space<vmem>>, vector<8x32xf32>
      tpu.vector_store %arg18[%c0_89, %c48], %44 {strides = array<i32>} : memref<8x80xf32, #tpu.memory_space<vmem>>, vector<8x32xf32>,
    } else {
    }
    %c0 = arith.constant 0 : index
    %c0_1 = arith.constant 0 : index
    %3 = vector.load %arg18[%c0, %c0_1] : memref<8x80xf32, #tpu.memory_space<vmem>>, vector<8x80xf32>
    %c0_2 = arith.constant 0 : index
    %c0_3 = arith.constant 0 : index
    %4 = vector.load %arg14[%c0_2, %c0_3] : memref<80x128xf32, #tpu.memory_space<vmem>>, vector<80x128xf32>
    %cst = arith.constant dense<0.000000e+00> : vector<8x128xf32>
    %5 = tpu.matmul %3, %4, %cst {dimension_numbers = #tpu.dot_dimension_numbers<[1], [0], [0], [1], [0, 0, 1, 1], [], []>} : vector<8x80xf32>, vector<80x128xf32>, vector<8x128xf32> -> vector<8x128xf32>
    %c0_4 = arith.constant 0 : index
    %c0_5 = arith.constant 0 : index
    %6 = vector.load %arg15[%c0_4, %c0_5] : memref<1x128xf32, #tpu.memory_space<vmem>>, vector<1x128xf32>
    %7 = vector.broadcast %6 : vector<1x128xf32> to vector<8x128xf32>
    %8 = arith.addf %5, %7 : vector<8x128xf32>
    %c0_6 = arith.constant 0 : index
    %c0_7 = arith.constant 0 : index
    %9 = vector.load %arg16[%c0_6, %c0_7] : memref<8x128xf32, #tpu.memory_space<vmem>>, vector<8x128xf32>
    tpu.vector_store %arg16[%c0_6, %c0_7], %8 {strides = array<i32>} : memref<8x128xf32, #tpu.memory_space<vmem>>, vector<8x128xf32>,
    return
  }
  func.func @transform_0(%arg0: i32, %arg1: i32) -> (i32, i32) {
    %c0_i32 = arith.constant 0 : i32
    %c0_i32_0 = arith.constant 0 : i32
    return %arg0, %c0_i32 : i32, i32
  }
  func.func @transform_1(%arg0: i32, %arg1: i32) -> (i32, i32, i32) {
    %c0_i32 = arith.constant 0 : i32
    %c0_i32_0 = arith.constant 0 : i32
    %c0_i32_1 = arith.constant 0 : i32
    return %arg0, %c0_i32, %c0_i32_0 : i32, i32, i32
  }
  func.func @transform_2(%arg0: i32, %arg1: i32) -> (i32, i32) {
    %c0_i32 = arith.constant 0 : i32
    %c0_i32_0 = arith.constant 0 : i32
    return %arg0, %c0_i32 : i32, i32
  }
  func.func @transform_3(%arg0: i32, %arg1: i32) -> (i32, i32) {
    %c0_i32 = arith.constant 0 : i32
    %c0_i32_0 = arith.constant 0 : i32
    %c0_i32_1 = arith.constant 0 : i32
    return %c0_i32, %c0_i32_0 : i32, i32
  }
  func.func @transform_4(%arg0: i32, %arg1: i32) -> (i32, i32) {
    %c0_i32 = arith.constant 0 : i32
    %c0_i32_0 = arith.constant 0 : i32
    %c0_i32_1 = arith.constant 0 : i32
    return %c0_i32, %c0_i32_0 : i32, i32
  }
  func.func @transform_5(%arg0: i32, %arg1: i32) -> (i32, i32) {
    %c0_i32 = arith.constant 0 : i32
    %c0_i32_0 = arith.constant 0 : i32
    %c0_i32_1 = arith.constant 0 : i32
    return %c0_i32, %c0_i32_0 : i32, i32
  }
  func.func @transform_6(%arg0: i32, %arg1: i32) -> (i32, i32) {
    %c0_i32 = arith.constant 0 : i32
    %c0_i32_0 = arith.constant 0 : i32
    %c0_i32_1 = arith.constant 0 : i32
    return %c0_i32, %c0_i32_0 : i32, i32
  }
  func.func @transform_7(%arg0: i32, %arg1: i32) -> (i32, i32, i32) {
    %c0_i32 = arith.constant 0 : i32
    %c0_i32_0 = arith.constant 0 : i32
    %c0_i32_1 = arith.constant 0 : i32
    %c0_i32_2 = arith.constant 0 : i32
    return %c0_i32, %c0_i32_0, %c0_i32_1 : i32, i32, i32
  }
  func.func @transform_8(%arg0: i32, %arg1: i32) -> (i32, i32, i32) {
    %c0_i32 = arith.constant 0 : i32
    %c0_i32_0 = arith.constant 0 : i32
    %c0_i32_1 = arith.constant 0 : i32
    %c0_i32_2 = arith.constant 0 : i32
    return %c0_i32, %c0_i32_0, %c0_i32_1 : i32, i32, i32
  }
  func.func @transform_9(%arg0: i32, %arg1: i32) -> (i32, i32, i32) {
    %c0_i32 = arith.constant 0 : i32
    %c0_i32_0 = arith.constant 0 : i32
    %c0_i32_1 = arith.constant 0 : i32
    %c0_i32_2 = arith.constant 0 : i32
    return %c0_i32, %c0_i32_0, %c0_i32_1 : i32, i32, i32
  }
  func.func @transform_10(%arg0: i32, %arg1: i32) -> (i32, i32, i32) {
    %c0_i32 = arith.constant 0 : i32
    %c0_i32_0 = arith.constant 0 : i32
    %c0_i32_1 = arith.constant 0 : i32
    %c0_i32_2 = arith.constant 0 : i32
    return %c0_i32, %c0_i32_0, %c0_i32_1 : i32, i32, i32
  }
  func.func @transform_11(%arg0: i32, %arg1: i32) -> (i32, i32, i32) {
    %c0_i32 = arith.constant 0 : i32
    %c0_i32_0 = arith.constant 0 : i32
    %c0_i32_1 = arith.constant 0 : i32
    %c0_i32_2 = arith.constant 0 : i32
    return %c0_i32, %c0_i32_0, %c0_i32_1 : i32, i32, i32
  }
  func.func @transform_12(%arg0: i32, %arg1: i32) -> (i32, i32) {
    %c0_i32 = arith.constant 0 : i32
    %c0_i32_0 = arith.constant 0 : i32
    return %c0_i32, %arg1 : i32, i32
  }
  func.func @transform_13(%arg0: i32, %arg1: i32) -> (i32, i32) {
    %c0_i32 = arith.constant 0 : i32
    %c0_i32_0 = arith.constant 0 : i32
    return %c0_i32, %arg1 : i32, i32
  }
  func.func @transform_14(%arg0: i32, %arg1: i32) -> (i32, i32) {
    %c0_i32 = arith.constant 0 : i32
    return %arg0, %arg1 : i32, i32
  }
  func.func @transform_15(%arg0: i32, %arg1: i32) -> (i32, i32) {
    %c0_i32 = arith.constant 0 : i32
    %c0_i32_0 = arith.constant 0 : i32
    return %arg0, %c0_i32 : i32, i32
  }
}

</mosaic_0001>

<llo_original>
// kernel: tpu_custom_call.1
$region0: #{tpu_custom_call.1}
  #allocation0 [shape = 'u32[]', space=smem, size = 0x4, offset = 0x4, fixed_abs, tag = 'smem constant byte address 0x4 - core index']
  #allocation1 [shape = 'u32[144,128]{1,0:T(1,128)}', space=vmem, size = 0x12000, scoped, tag = 'internal scratch']
  #allocation2 [shape = 'f32[8,80]{1,0:T(8,128)}', space=vmem, size = 0x1000, scoped, tag = 'scratch operand']
  %s0 = inlined_call_operand.hbm [shape: f32[8,16], index: 0, kind: input, shape index: {}]
  %s1 = inlined_call_operand.hbm [shape: f32[8,8,32], index: 1, kind: input, shape index: {}]
  %s2 = inlined_call_operand.hbm [shape: f32[8,32], index: 2, kind: input, shape index: {}]
  %s3 = inlined_call_operand.hbm [shape: f32[32,32], index: 3, kind: input, shape index: {}]
  %s4 = inlined_call_operand.hbm [shape: f32[32,32], index: 4, kind: input, shape index: {}]
  %s5 = inlined_call_operand.hbm [shape: f32[1,32], index: 5, kind: input, shape index: {}]
  %s6 = inlined_call_operand.hbm [shape: f32[1,32], index: 6, kind: input, shape index: {}]
  %s7 = inlined_call_operand.hbm [shape: f32[3,16,32], index: 7, kind: input, shape index: {}]
  %s8 = inlined_call_operand.hbm [shape: f32[3,32,32], index: 8, kind: input, shape index: {}]
  %s9 = inlined_call_operand.hbm [shape: f32[3,32,32], index: 9, kind: input, shape index: {}]
  %s10 = inlined_call_operand.hbm [shape: f32[3,1,32], index: 10, kind: input, shape index: {}]
  %s11 = inlined_call_operand.hbm [shape: f32[3,1,32], index: 11, kind: input, shape index: {}]
  %s12 = inlined_call_operand.hbm [shape: f32[80,128], index: 12, kind: input, shape index: {}]
  %s13 = inlined_call_operand.hbm [shape: f32[1,128], index: 13, kind: input, shape index: {}]
  %s14 = inlined_call_operand.hbm [shape: f32[8,128], index: 14, kind: output, shape index: {0}]
  %s15 = inlined_call_operand.hbm [shape: f32[8,32], index: 15, kind: output, shape index: {1}]
  %16 = xla_tuple %s14, %s15
  %s17 = sld [smem:[#allocation0]]
  $region134: #{tpu_custom_call.1} parent=0
    _
  %s19 = ssub.s32 1, %s17
  %s20 = scalar_select 0, %s19, %s17
  $region1: #{tpu_custom_call.1} parent=0
    #allocation3 [shape = 'u8[4096]{0}', space=vmem, size = 0x1000, scoped, tag = 'input window, operand 0, single buffered']
    #allocation4 [shape = 's32[1]{0}', space=sflag, size = 0x4, scoped, tag = 'scoped memory for tpu_custom_call.1']
    #allocation5 [shape = 's32[1]{0}', space=sflag, size = 0x4, scoped, tag = 'scoped memory for tpu_custom_call.1']
    #allocation6 [shape = 'u8[32768]{0}', space=vmem, size = 0x8000, scoped, tag = 'input window, operand 1, single buffered']
    #allocation7 [shape = 's32[1]{0}', space=sflag, size = 0x4, scoped, tag = 'scoped memory for tpu_custom_call.1']
    #allocation8 [shape = 'u8[4096]{0}', space=vmem, size = 0x1000, scoped, tag = 'input window, operand 2, single buffered']
    #allocation9 [shape = 'u8[16384]{0}', space=vmem, size = 0x4000, scoped, tag = 'input window, operand 3, single buffered']
    #allocation10 [shape = 's32[1]{0}', space=sflag, size = 0x4, scoped, tag = 'scoped memory for tpu_custom_call.1']
    #allocation11 [shape = 'u8[16384]{0}', space=vmem, size = 0x4000, scoped, tag = 'input window, operand 4, single buffered']
    #allocation12 [shape = 'u8[512]{0}', space=vmem, size = 0x400, scoped, tag = 'input window, operand 5, single buffered']
    #allocation13 [shape = 's32[1]{0}', space=sflag, size = 0x4, scoped, tag = 'scoped memory for tpu_custom_call.1']
    #allocation14 [shape = 'u8[512]{0}', space=vmem, size = 0x400, scoped, tag = 'input window, operand 6, single buffered']
    #allocation15 [shape = 'u8[24576]{0}', space=vmem, size = 0x6000, scoped, tag = 'input window, operand 7, single buffered']
    #allocation16 [shape = 's32[1]{0}', space=sflag, size = 0x4, scoped, tag = 'scoped memory for tpu_custom_call.1']
    #allocation17 [shape = 'u8[49152]{0}', space=vmem, size = 0xc000, scoped, tag = 'input window, operand 8, single buffered']
    #allocation18 [shape = 'u8[49152]{0}', space=vmem, size = 0xc000, scoped, tag = 'input window, operand 9, single buffered']
    #allocation19 [shape = 's32[1]{0}', space=sflag, size = 0x4, scoped, tag = 'scoped memory for tpu_custom_call.1']
    #allocation20 [shape = 'u8[1536]{0}', space=vmem, size = 0x800, scoped, tag = 'input window, operand 10, single buffered']
    #allocation21 [shape = 'u8[1536]{0}', space=vmem, size = 0x800, scoped, tag = 'input window, operand 11, single buffered']
    #allocation22 [shape = 's32[1]{0}', space=sflag, size = 0x4, scoped, tag = 'scoped memory for tpu_custom_call.1']
    #allocation23 [shape = 'u8[40960]{0}', space=vmem, size = 0xa000, scoped, tag = 'input window, operand 12, single buffered']
    #allocation24 [shape = 'u8[512]{0}', space=vmem, size = 0x400, scoped, tag = 'input window, operand 13, single buffered']
    #allocation25 [shape = 's32[1]{0}', space=sflag, size = 0x4, scoped, tag = 'scoped memory for tpu_custom_call.1']
    #allocation26 [shape = 'u8[4096]{0}', space=vmem, size = 0x1000, scoped, tag = 'output window, operand 0, single buffered']
    #allocation27 [shape = 'u8[4096]{0}', space=vmem, size = 0x1000, scoped, tag = 'output window, operand 1, single buffered']
    #allocation28 [shape = 's32[1]{0}', space=sflag, size = 0x4, scoped, tag = 'scoped memory for tpu_custom_call.1']
    %21 = vsyncpa [#allocation4], 0
    %22 = vsyncpa [#allocation7], 0
    %23 = vsyncpa [#allocation10], 0
    %24 = vsyncpa [#allocation13], 0
    %25 = vsyncpa [#allocation16], 0
    %26 = vsyncpa [#allocation19], 0
    %27 = vsyncpa [#allocation22], 0
    %28 = vsyncpa [#allocation25], 0
    %29 = vsyncpa [#allocation5], 0
    %30 = vsyncpa [#allocation28], 0
    // Predicated region
    $region2: #{tpu_custom_call.1} parent=1 // pred_check
      _
    $region3: #{tpu_custom_call.1} parent=1 // pred_check_branch
      %32 = sbr.rel (0) target = $region5
    $region4: #{tpu_custom_call.1} parent=1 // pred_region
      %s34 = ssub.s32 128, 128
      %35 = vsyncadd [#allocation4], %s34
      %s37 = sshll.u32 [#allocation3], 4
      %s38 = int_to_ptr.vmem [resolvable:$true] %s37
      %40 = dma.hbm_to_vmem [thread:$0]  %s0, 128, %s38, [#allocation4]
    $region5: #{tpu_custom_call.1} parent=1 // pred_fallthru
      _
    // Predicated region
    $region6: #{tpu_custom_call.1} parent=1 // pred_check
      _
    $region7: #{tpu_custom_call.1} parent=1 // pred_check_branch
      %42 = sbr.rel (0) target = $region9
    $region8: #{tpu_custom_call.1} parent=1 // pred_region
      %s44 = ssub.s32 1024, 1024
      %45 = vsyncadd [#allocation7], %s44
      %s46 = sshll.u32 [#allocation6], 4
      %s47 = int_to_ptr.vmem [resolvable:$true] %s46
      %52 = dma.hbm_to_vmem [thread:$0]  %s1, 1024, %s47, [#allocation7], 128, 128, 8
    $region9: #{tpu_custom_call.1} parent=1 // pred_fallthru
      _
    // Predicated region
    $region10: #{tpu_custom_call.1} parent=1 // pred_check
      _
    $region11: #{tpu_custom_call.1} parent=1 // pred_check_branch
      %54 = sbr.rel (0) target = $region13
    $region12: #{tpu_custom_call.1} parent=1 // pred_region
      %s56 = ssub.s32 128, 128
      %57 = vsyncadd [#allocation7], %s56
      %s59 = sshll.u32 [#allocation8], 4
      %s60 = int_to_ptr.vmem [resolvable:$true] %s59
      %62 = dma.hbm_to_vmem [thread:$0]  %s2, 128, %s60, [#allocation7]
    $region13: #{tpu_custom_call.1} parent=1 // pred_fallthru
      _
    // Predicated region
    $region14: #{tpu_custom_call.1} parent=1 // pred_check
      _
    $region15: #{tpu_custom_call.1} parent=1 // pred_check_branch
      %64 = sbr.rel (0) target = $region17
    $region16: #{tpu_custom_call.1} parent=1 // pred_region
      %s66 = ssub.s32 512, 512
      %67 = vsyncadd [#allocation10], %s66
      %s68 = sshll.u32 [#allocation9], 4
      %s69 = int_to_ptr.vmem [resolvable:$true] %s68
      %74 = dma.hbm_to_vmem [thread:$0]  %s3, 512, %s69, [#allocation10], 128, 128, 8
    $region17: #{tpu_custom_call.1} parent=1 // pred_fallthru
      _
    // Predicated region
    $region18: #{tpu_custom_call.1} parent=1 // pred_check
      _
    $region19: #{tpu_custom_call.1} parent=1 // pred_check_branch
      %76 = sbr.rel (0) target = $region21
    $region20: #{tpu_custom_call.1} parent=1 // pred_region
      %s78 = ssub.s32 512, 512
      %79 = vsyncadd [#allocation10], %s78
      %s80 = sshll.u32 [#allocation11], 4
      %s81 = int_to_ptr.vmem [resolvable:$true] %s80
      %86 = dma.hbm_to_vmem [thread:$0]  %s4, 512, %s81, [#allocation10], 128, 128, 8
    $region21: #{tpu_custom_call.1} parent=1 // pred_fallthru
      _
    // Predicated region
    $region22: #{tpu_custom_call.1} parent=1 // pred_check
      _
    $region23: #{tpu_custom_call.1} parent=1 // pred_check_branch
      %88 = sbr.rel (0) target = $region25
    $region24: #{tpu_custom_call.1} parent=1 // pred_region
      %s90 = ssub.s32 16, 16
      %91 = vsyncadd [#allocation13], %s90
      %s93 = sshll.u32 [#allocation12], 4
      %s94 = int_to_ptr.vmem [resolvable:$true] %s93
      %96 = dma.hbm_to_vmem [thread:$0]  %s5, 16, %s94, [#allocation13]
    $region25: #{tpu_custom_call.1} parent=1 // pred_fallthru
      _
    // Predicated region
    $region26: #{tpu_custom_call.1} parent=1 // pred_check
      _
    $region27: #{tpu_custom_call.1} parent=1 // pred_check_branch
      %98 = sbr.rel (0) target = $region29
    $region28: #{tpu_custom_call.1} parent=1 // pred_region
      %s100 = ssub.s32 16, 16
      %101 = vsyncadd [#allocation13], %s100
      %s103 = sshll.u32 [#allocation14], 4
      %s104 = int_to_ptr.vmem [resolvable:$true] %s103
      %106 = dma.hbm_to_vmem [thread:$0]  %s6, 16, %s104, [#allocation13]
    $region29: #{tpu_custom_call.1} parent=1 // pred_fallthru
      _
    // Predicated region
    $region30: #{tpu_custom_call.1} parent=1 // pred_check
      _
    $region31: #{tpu_custom_call.1} parent=1 // pred_check_branch
      %108 = sbr.rel (0) target = $region33
    $region32: #{tpu_custom_call.1} parent=1 // pred_region
      %s110 = ssub.s32 768, 768
      %111 = vsyncadd [#allocation16], %s110
      %s112 = sshll.u32 [#allocation15], 4
      %s113 = int_to_ptr.vmem [resolvable:$true] %s112
      %118 = dma.hbm_to_vmem [thread:$0]  %s7, 768, %s113, [#allocation16], 128, 128, 8
    $region33: #{tpu_custom_call.1} parent=1 // pred_fallthru
      _
    // Predicated region
    $region34: #{tpu_custom_call.1} parent=1 // pred_check
      _
    $region35: #{tpu_custom_call.1} parent=1 // pred_check_branch
      %120 = sbr.rel (0) target = $region37
    $region36: #{tpu_custom_call.1} parent=1 // pred_region
      %s122 = ssub.s32 1536, 1536
      %123 = vsyncadd [#allocation16], %s122
      %s124 = sshll.u32 [#allocation17], 4
      %s125 = int_to_ptr.vmem [resolvable:$true] %s124
      %130 = dma.hbm_to_vmem [thread:$0]  %s8, 1536, %s125, [#allocation16], 128, 128, 8
    $region37: #{tpu_custom_call.1} parent=1 // pred_fallthru
      _
    // Predicated region
    $region38: #{tpu_custom_call.1} parent=1 // pred_check
      _
    $region39: #{tpu_custom_call.1} parent=1 // pred_check_branch
      %132 = sbr.rel (0) target = $region41
    $region40: #{tpu_custom_call.1} parent=1 // pred_region
      %s134 = ssub.s32 1536, 1536
      %135 = vsyncadd [#allocation19], %s134
      %s136 = sshll.u32 [#allocation18], 4
      %s137 = int_to_ptr.vmem [resolvable:$true] %s136
      %142 = dma.hbm_to_vmem [thread:$0]  %s9, 1536, %s137, [#allocation19], 128, 128, 8
    $region41: #{tpu_custom_call.1} parent=1 // pred_fallthru
      _
    // Predicated region
    $region42: #{tpu_custom_call.1} parent=1 // pred_check
      _
    $region43: #{tpu_custom_call.1} parent=1 // pred_check_branch
      %144 = sbr.rel (0) target = $region45
    $region44: #{tpu_custom_call.1} parent=1 // pred_region
      %s146 = ssub.s32 48, 48
      %147 = vsyncadd [#allocation19], %s146
      %s148 = sshll.u32 [#allocation20], 4
      %s149 = int_to_ptr.vmem [resolvable:$true] %s148
      %154 = dma.hbm_to_vmem [thread:$0]  %s10, 48, %s149, [#allocation19], 16, 16, 1
    $region45: #{tpu_custom_call.1} parent=1 // pred_fallthru
      _
    // Predicated region
    $region46: #{tpu_custom_call.1} parent=1 // pred_check
      _
    $region47: #{tpu_custom_call.1} parent=1 // pred_check_branch
      %156 = sbr.rel (0) target = $region49
    $region48: #{tpu_custom_call.1} parent=1 // pred_region
      %s158 = ssub.s32 48, 48
      %159 = vsyncadd [#allocation22], %s158
      %s160 = sshll.u32 [#allocation21], 4
      %s161 = int_to_ptr.vmem [resolvable:$true] %s160
      %166 = dma.hbm_to_vmem [thread:$0]  %s11, 48, %s161, [#allocation22], 16, 16, 1
    $region49: #{tpu_custom_call.1} parent=1 // pred_fallthru
      _
    // Predicated region
    $region50: #{tpu_custom_call.1} parent=1 // pred_check
      _
    $region51: #{tpu_custom_call.1} parent=1 // pred_check_branch
      %168 = sbr.rel (0) target = $region53
    $region52: #{tpu_custom_call.1} parent=1 // pred_region
      %s170 = ssub.s32 1280, 1280
      %171 = vsyncadd [#allocation22], %s170
      %s172 = sshll.u32 [#allocation23], 4
      %s173 = int_to_ptr.vmem [resolvable:$true] %s172
      %178 = dma.hbm_to_vmem [thread:$0]  %s12, 1280, %s173, [#allocation22], 128, 128, 8
    $region53: #{tpu_custom_call.1} parent=1 // pred_fallthru
      _
    // Predicated region
    $region54: #{tpu_custom_call.1} parent=1 // pred_check
      _
    $region55: #{tpu_custom_call.1} parent=1 // pred_check_branch
      %180 = sbr.rel (0) target = $region57
    $region56: #{tpu_custom_call.1} parent=1 // pred_region
      %s182 = ssub.s32 16, 16
      %183 = vsyncadd [#allocation25], %s182
      %s185 = sshll.u32 [#allocation24], 4
      %s186 = int_to_ptr.vmem [resolvable:$true] %s185
      %188 = dma.hbm_to_vmem [thread:$0]  %s13, 16, %s186, [#allocation25]
    $region57: #{tpu_custom_call.1} parent=1 // pred_fallthru
      _
    // Predicated region
    $region58: #{tpu_custom_call.1} parent=1 // pred_check
      _
    $region59: #{tpu_custom_call.1} parent=1 // pred_check_branch
      %190 = sbr.rel (0) target = $region61
    $region60: #{tpu_custom_call.1} parent=1 // pred_region
      %191 = dma.done [#allocation4], 128
    $region61: #{tpu_custom_call.1} parent=1 // pred_fallthru
      _
    // Predicated region
    $region62: #{tpu_custom_call.1} parent=1 // pred_check
      _
    $region63: #{tpu_custom_call.1} parent=1 // pred_check_branch
      %193 = sbr.rel (0) target = $region65
    $region64: #{tpu_custom_call.1} parent=1 // pred_region
      %194 = dma.done [#allocation7], 1024
    $region65: #{tpu_custom_call.1} parent=1 // pred_fallthru
      _
    // Predicated region
    $region66: #{tpu_custom_call.1} parent=1 // pred_check
      _
    $region67: #{tpu_custom_call.1} parent=1 // pred_check_branch
      %196 = sbr.rel (0) target = $region69
    $region68: #{tpu_custom_call.1} parent=1 // pred_region
      %197 = dma.done [#allocation7], 128
    $region69: #{tpu_custom_call.1} parent=1 // pred_fallthru
      _
    // Predicated region
    $region70: #{tpu_custom_call.1} parent=1 // pred_check
      _
    $region71: #{tpu_custom_call.1} parent=1 // pred_check_branch
      %199 = sbr.rel (0) target = $region73
    $region72: #{tpu_custom_call.1} parent=1 // pred_region
      %200 = dma.done [#allocation10], 512
    $region73: #{tpu_custom_call.1} parent=1 // pred_fallthru
      _
    // Predicated region
    $region74: #{tpu_custom_call.1} parent=1 // pred_check
      _
    $region75: #{tpu_custom_call.1} parent=1 // pred_check_branch
      %202 = sbr.rel (0) target = $region77
    $region76: #{tpu_custom_call.1} parent=1 // pred_region
      %203 = dma.done [#allocation10], 512
    $region77: #{tpu_custom_call.1} parent=1 // pred_fallthru
      _
    // Predicated region
    $region78: #{tpu_custom_call.1} parent=1 // pred_check
      _
    $region79: #{tpu_custom_call.1} parent=1 // pred_check_branch
      %205 = sbr.rel (0) target = $region81
    $region80: #{tpu_custom_call.1} parent=1 // pred_region
      %206 = dma.done [#allocation13], 16
    $region81: #{tpu_custom_call.1} parent=1 // pred_fallthru
      _
    // Predicated region
    $region82: #{tpu_custom_call.1} parent=1 // pred_check
      _
    $region83: #{tpu_custom_call.1} parent=1 // pred_check_branch
      %208 = sbr.rel (0) target = $region85
    $region84: #{tpu_custom_call.1} parent=1 // pred_region
      %209 = dma.done [#allocation13], 16
    $region85: #{tpu_custom_call.1} parent=1 // pred_fallthru
      _
    // Predicated region
    $region86: #{tpu_custom_call.1} parent=1 // pred_check
      _
    $region87: #{tpu_custom_call.1} parent=1 // pred_check_branch
      %211 = sbr.rel (0) target = $region89
    $region88: #{tpu_custom_call.1} parent=1 // pred_region
      %212 = dma.done [#allocation16], 768
    $region89: #{tpu_custom_call.1} parent=1 // pred_fallthru
      _
    // Predicated region
    $region90: #{tpu_custom_call.1} parent=1 // pred_check
      _
    $region91: #{tpu_custom_call.1} parent=1 // pred_check_branch
      %214 = sbr.rel (0) target = $region93
    $region92: #{tpu_custom_call.1} parent=1 // pred_region
      %215 = dma.done [#allocation16], 1536
    $region93: #{tpu_custom_call.1} parent=1 // pred_fallthru
      _
    // Predicated region
    $region94: #{tpu_custom_call.1} parent=1 // pred_check
      _
    $region95: #{tpu_custom_call.1} parent=1 // pred_check_branch
      %217 = sbr.rel (0) target = $region97
    $region96: #{tpu_custom_call.1} parent=1 // pred_region
      %218 = dma.done [#allocation19], 1536
    $region97: #{tpu_custom_call.1} parent=1 // pred_fallthru
      _
    // Predicated region
    $region98: #{tpu_custom_call.1} parent=1 // pred_check
      _
    $region99: #{tpu_custom_call.1} parent=1 // pred_check_branch
      %220 = sbr.rel (0) target = $region101
    $region100: #{tpu_custom_call.1} parent=1 // pred_region
      %221 = dma.done [#allocation19], 48
    $region101: #{tpu_custom_call.1} parent=1 // pred_fallthru
      _
    // Predicated region
    $region102: #{tpu_custom_call.1} parent=1 // pred_check
      _
    $region103: #{tpu_custom_call.1} parent=1 // pred_check_branch
      %223 = sbr.rel (0) target = $region105
    $region104: #{tpu_custom_call.1} parent=1 // pred_region
      %224 = dma.done [#allocation22], 48
    $region105: #{tpu_custom_call.1} parent=1 // pred_fallthru
      _
    // Predicated region
    $region106: #{tpu_custom_call.1} parent=1 // pred_check
      _
    $region107: #{tpu_custom_call.1} parent=1 // pred_check_branch
      %226 = sbr.rel (0) target = $region109
    $region108: #{tpu_custom_call.1} parent=1 // pred_region
      %227 = dma.done [#allocation22], 1280
    $region109: #{tpu_custom_call.1} parent=1 // pred_fallthru
      _
    // Predicated region
    $region110: #{tpu_custom_call.1} parent=1 // pred_check
      _
    $region111: #{tpu_custom_call.1} parent=1 // pred_check_branch
      %229 = sbr.rel (0) target = $region113
    $region112: #{tpu_custom_call.1} parent=1 // pred_region
      %230 = dma.done [#allocation25], 16
    $region113: #{tpu_custom_call.1} parent=1 // pred_fallthru
      _
    %p231 = scmp.eq.s32.totalorder 0, 0
    // Predicated region
    $region114: #{tpu_custom_call.1} parent=1 // pred_check
      %p232 = pneg %p231
    $region115: #{tpu_custom_call.1} parent=1 // pred_check_branch
      %234 = sbr.rel (%p232) target = $region117
    $region116: #{tpu_custom_call.1} parent=1 // pred_region
      %v235 = vld [vmem:[#allocation3] sm:$0xff]
      %v236 = vld [vmem:[#allocation8] sm:$0xff]
      %v237 = vld [vmem:[#allocation6] sm:$0xff]
      %v238 = vld [vmem:[#allocation6 + $0x8] sm:$0xff]
      %v239 = vld [vmem:[#allocation6 + $0x10] sm:$0xff]
      %v240 = vld [vmem:[#allocation6 + $0x18] sm:$0xff]
      %v241 = vld [vmem:[#allocation6 + $0x20] sm:$0xff]
      %v242 = vld [vmem:[#allocation6 + $0x28] sm:$0xff]
      %v243 = vld [vmem:[#allocation6 + $0x30] sm:$0xff]
      %v244 = vld [vmem:[#allocation6 + $0x38] sm:$0xff]
      %v245 = vld [vmem:[#allocation11] sm:$0xff]
      %v246 = vld [vmem:[#allocation11 + $0x8] sm:$0xff]
      %v247 = vld [vmem:[#allocation11 + $0x10] sm:$0xff]
      %v248 = vld [vmem:[#allocation11 + $0x18] sm:$0xff]
      %vm249 = vcmask 261120
      %v251 = vsel %vm249, %v237, 0
      %v254 = vsel %vm249, %v238, 0
      %v257 = vsel %vm249, %v239, 0
      %v260 = vsel %vm249, %v240, 0
      %v263 = vsel %vm249, %v241, 0
      %v266 = vsel %vm249, %v242, 0
      %v269 = vsel %vm249, %v243, 0
      %v272 = vsel %vm249, %v244, 0
      %274 = vmatprep.subr.mxu0 0.0
      %275 = vmatpush1.msra.mxu0 %v245
      %276 = vmatprep.subr.mxu0 0.0
      %277 = vmatpush1.msra.mxu0 %v246
      %278 = vmatprep.subr.mxu0 0.0
      %279 = vmatpush1.msra.mxu0 %v247
      %280 = vmatprep.subr.mxu0 0.0
      %281 = vmatpush1.msra.mxu0 %v248
      %282 = vmatprep.subr.mxu0 0.0
      %283 = vmatpush1.msra.mxu0 0.0
      %284 = vmatprep.subr.mxu0 0.0
      %285 = vmatpush1.msra.mxu0 0.0
      %286 = vmatprep.subr.mxu0 0.0
      %287 = vmatpush1.msra.mxu0 0.0
      %288 = vmatprep.subr.mxu0 0.0
      %289 = vmatpush1.msra.mxu0 0.0
      %290 = vmatprep.subr.mxu0 0.0
      %291 = vmatpush1.msra.mxu0 0.0
      %292 = vmatprep.subr.mxu0 0.0
      %293 = vmatpush1.msra.mxu0 0.0
      %294 = vmatprep.subr.mxu0 0.0
      %295 = vmatpush1.msra.mxu0 0.0
      %296 = vmatprep.subr.mxu0 0.0
      %297 = vmatpush1.msra.mxu0 0.0
      %298 = vmatprep.subr.mxu0 0.0
      %299 = vmatpush1.msra.mxu0 0.0
      %300 = vmatprep.subr.mxu0 0.0
      %301 = vmatpush1.msra.mxu0 0.0
      %302 = vmatprep.subr.mxu0 0.0
      %303 = vmatpush1.msra.mxu0 0.0
      %304 = vmatprep.subr.mxu0 0.0
      %305 = vmatpush1.msra.mxu0 0.0
      %306 = vmatprep.subr.mxu0 0.0
      %307 = vmatpush1.msra.mxu0 0.0
      %308 = vmatprep.subr.mxu0 0.0
      %309 = vmatpush1.msra.mxu0 0.0
      %310 = vmatprep.subr.mxu0 0.0
      %311 = vmatpush1.msra.mxu0 0.0
      %312 = vmatprep.subr.mxu0 0.0
      %313 = vmatpush1.msra.mxu0 0.0
      %314 = vmatprep.subr.mxu0 0.0
      %315 = vmatpush1.msra.mxu0 0.0
      %316 = vmatprep.subr.mxu0 0.0
      %317 = vmatpush1.msra.mxu0 0.0
      %318 = vmatprep.subr.mxu0 0.0
      %319 = vmatpush1.msra.mxu0 0.0
      %320 = vmatprep.subr.mxu0 0.0
      %321 = vmatpush1.msra.mxu0 0.0
      %322 = vmatprep.subr.mxu0 0.0
      %323 = vmatpush1.msra.mxu0 0.0
      %324 = vmatprep.subr.mxu0 0.0
      %325 = vmatpush1.msra.mxu0 0.0
      %326 = vmatprep.subr.mxu0 0.0
      %327 = vmatpush1.msra.mxu0 0.0
      %328 = vmatprep.subr.mxu0 0.0
      %329 = vmatpush1.msra.mxu0 0.0
      %330 = vmatprep.subr.mxu0 0.0
      %331 = vmatpush1.msra.mxu0 0.0
      %332 = vmatprep.subr.mxu0 0.0
      %333 = vmatpush1.msra.mxu0 0.0
      %334 = vmatprep.subr.mxu0 0.0
      %335 = vmatpush1.msra.mxu0 0.0
      %336 = vmatprep.subr.mxu0 0.0
      %337 = vmatpush1.msra.mxu0 0.0
      %338 = vmatprep.mubr.f32.mxu0 0.0
      %339 = vmatmul.mubr.f32.gmra.mrb[0].mxu0 %v251
      %v340 = vpop.f32.mrb[0].mxu0
      %v341 = vadd.f32 0.0, %v340
      %v342 = vpop.f32.mrb[0].mxu0
      %343 = vmatprep.mubr.f32.mxu0 0.0
      %344 = vmatmul.mubr.f32.gmra.mrb[0].mxu0 %v254
      %v345 = vpop.f32.mrb[0].mxu0
      %v346 = vadd.f32 0.0, %v345
      %v347 = vpop.f32.mrb[0].mxu0
      %348 = vmatprep.mubr.f32.mxu0 0.0
      %349 = vmatmul.mubr.f32.gmra.mrb[0].mxu0 %v257
      %v350 = vpop.f32.mrb[0].mxu0
      %v351 = vadd.f32 0.0, %v350
      %v352 = vpop.f32.mrb[0].mxu0
      %353 = vmatprep.mubr.f32.mxu0 0.0
      %354 = vmatmul.mubr.f32.gmra.mrb[0].mxu0 %v260
      %v355 = vpop.f32.mrb[0].mxu0
      %v356 = vadd.f32 0.0, %v355
      %v357 = vpop.f32.mrb[0].mxu0
      %358 = vmatprep.mubr.f32.mxu0 0.0
      %359 = vmatmul.mubr.f32.gmra.mrb[0].mxu0 %v263
      %v360 = vpop.f32.mrb[0].mxu0
      %v361 = vadd.f32 0.0, %v360
      %v362 = vpop.f32.mrb[0].mxu0
      %363 = vmatprep.mubr.f32.mxu0 0.0
      %364 = vmatmul.mubr.f32.gmra.mrb[0].mxu0 %v266
      %v365 = vpop.f32.mrb[0].mxu0
      %v366 = vadd.f32 0.0, %v365
      %v367 = vpop.f32.mrb[0].mxu0
      %368 = vmatprep.mubr.f32.mxu0 0.0
      %369 = vmatmul.mubr.f32.gmra.mrb[0].mxu0 %v269
      %v370 = vpop.f32.mrb[0].mxu0
      %v371 = vadd.f32 0.0, %v370
      %v372 = vpop.f32.mrb[0].mxu0
      %373 = vmatprep.mubr.f32.mxu0 0.0
      %374 = vmatmul.mubr.f32.gmra.mrb[0].mxu0 %v272
      %v375 = vpop.f32.mrb[0].mxu0
      %v376 = vadd.f32 0.0, %v375
      %v377 = vpop.f32.mrb[0].mxu0
      %378 = vdwg.mxu0
      %v379 = vld [vmem:[#allocation9] sm:$0xff]
      %v380 = vld [vmem:[#allocation9 + $0x8] sm:$0xff]
      %v381 = vld [vmem:[#allocation9 + $0x10] sm:$0xff]
      %v382 = vld [vmem:[#allocation9 + $0x18] sm:$0xff]
      %v384 = vsel %vm249, %v236, 0
      %386 = vmatprep.subr.mxu0 0.0
      %387 = vmatpush1.msra.mxu0 %v379
      %388 = vmatprep.subr.mxu0 0.0
      %389 = vmatpush1.msra.mxu0 %v380
      %390 = vmatprep.subr.mxu0 0.0
      %391 = vmatpush1.msra.mxu0 %v381
      %392 = vmatprep.subr.mxu0 0.0
      %393 = vmatpush1.msra.mxu0 %v382
      %394 = vmatprep.subr.mxu0 0.0
      %395 = vmatpush1.msra.mxu0 0.0
      %396 = vmatprep.subr.mxu0 0.0
      %397 = vmatpush1.msra.mxu0 0.0
      %398 = vmatprep.subr.mxu0 0.0
      %399 = vmatpush1.msra.mxu0 0.0
      %400 = vmatprep.subr.mxu0 0.0
      %401 = vmatpush1.msra.mxu0 0.0
      %402 = vmatprep.subr.mxu0 0.0
      %403 = vmatpush1.msra.mxu0 0.0
      %404 = vmatprep.subr.mxu0 0.0
      %405 = vmatpush1.msra.mxu0 0.0
      %406 = vmatprep.subr.mxu0 0.0
      %407 = vmatpush1.msra.mxu0 0.0
      %408 = vmatprep.subr.mxu0 0.0
      %409 = vmatpush1.msra.mxu0 0.0
      %410 = vmatprep.subr.mxu0 0.0
      %411 = vmatpush1.msra.mxu0 0.0
      %412 = vmatprep.subr.mxu0 0.0
      %413 = vmatpush1.msra.mxu0 0.0
      %414 = vmatprep.subr.mxu0 0.0
      %415 = vmatpush1.msra.mxu0 0.0
      %416 = vmatprep.subr.mxu0 0.0
      %417 = vmatpush1.msra.mxu0 0.0
      %418 = vmatprep.subr.mxu0 0.0
      %419 = vmatpush1.msra.mxu0 0.0
      %420 = vmatprep.subr.mxu0 0.0
      %421 = vmatpush1.msra.mxu0 0.0
      %422 = vmatprep.subr.mxu0 0.0
      %423 = vmatpush1.msra.mxu0 0.0
      %424 = vmatprep.subr.mxu0 0.0
      %425 = vmatpush1.msra.mxu0 0.0
      %426 = vmatprep.subr.mxu0 0.0
      %427 = vmatpush1.msra.mxu0 0.0
      %428 = vmatprep.subr.mxu0 0.0
      %429 = vmatpush1.msra.mxu0 0.0
      %430 = vmatprep.subr.mxu0 0.0
      %431 = vmatpush1.msra.mxu0 0.0
      %432 = vmatprep.subr.mxu0 0.0
      %433 = vmatpush1.msra.mxu0 0.0
      %434 = vmatprep.subr.mxu0 0.0
      %435 = vmatpush1.msra.mxu0 0.0
      %436 = vmatprep.subr.mxu0 0.0
      %437 = vmatpush1.msra.mxu0 0.0
      %438 = vmatprep.subr.mxu0 0.0
      %439 = vmatpush1.msra.mxu0 0.0
      %440 = vmatprep.subr.mxu0 0.0
      %441 = vmatpush1.msra.mxu0 0.0
      %442 = vmatprep.subr.mxu0 0.0
      %443 = vmatpush1.msra.mxu0 0.0
      %444 = vmatprep.subr.mxu0 0.0
      %445 = vmatpush1.msra.mxu0 0.0
      %446 = vmatprep.subr.mxu0 0.0
      %447 = vmatpush1.msra.mxu0 0.0
      %448 = vmatprep.subr.mxu0 0.0
      %449 = vmatpush1.msra.mxu0 0.0
      %450 = vmatprep.mubr.f32.mxu0 0.0
      %451 = vmatmul.mubr.f32.gmra.mrb[0].mxu0 %v384
      %v452 = vpop.f32.mrb[0].mxu0
      %v453 = vadd.f32 0.0, %v452
      %v454 = vpop.f32.mrb[0].mxu0
      %455 = vdwg.mxu0
      %v457 = vcombine.high %v453, %v453
      %v459 = vunpack.c.l.s4 1966171168
      %v460 = vunpack.c.0.s8 %v459
      %v461 = vlaneseq
      %v462 = vshrl.u32 %v461, 7
      %v463 = vsub.s32 %v460, %v462
      %v464 = vrot.slane %v453, %v463
      %v466 = vunpack.c.l.s4 1966171168
      %v467 = vunpack.c.0.s8 %v466
      %v468 = vlaneseq
      %v469 = vshrl.u32 %v468, 7
      %v470 = vsub.s32 %v467, %v469
      %v471 = vrot.slane %v457, %v470
      %v472 = vcombine.high %v464, %v464
      %v473 = vcombine.high %v471, %v471
      %v475 = vunpack.c.l.s4 1966171168
      %v476 = vunpack.c.0.s8 %v475
      %v477 = vlaneseq
      %v478 = vshrl.u32 %v477, 7
      %v479 = vsub.s32 %v476, %v478
      %v480 = vrot.slane %v464, %v479
      %v482 = vunpack.c.l.s4 1966171168
      %v483 = vunpack.c.0.s8 %v482
      %v484 = vlaneseq
      %v485 = vshrl.u32 %v484, 7
      %v486 = vsub.s32 %v483, %v485
      %v487 = vrot.slane %v471, %v486
      %v489 = vunpack.c.l.s4 1966171168
      %v490 = vunpack.c.0.s8 %v489
      %v491 = vlaneseq
      %v492 = vshrl.u32 %v491, 7
      %v493 = vsub.s32 %v490, %v492
      %v494 = vrot.slane %v472, %v493
      %v496 = vunpack.c.l.s4 1966171168
      %v497 = vunpack.c.0.s8 %v496
      %v498 = vlaneseq
      %v499 = vshrl.u32 %v498, 7
      %v500 = vsub.s32 %v497, %v499
      %v501 = vrot.slane %v473, %v500
      %v502 = vcombine.high %v480, %v480
      %v503 = vcombine.high %v487, %v487
      %v504 = vcombine.high %v494, %v494
      %v505 = vcombine.high %v501, %v501
      %v506 = vlaneseq
      %v507 = vshrl.u32 %v506, 7
      %v508 = vsub.s32 0, %v507
      %v509 = vrot.slane %v480, %v508
      %v510 = vlaneseq
      %v511 = vshrl.u32 %v510, 7
      %v512 = vsub.s32 0, %v511
      %v513 = vrot.slane %v494, %v512
      %v514 = vlaneseq
      %v515 = vshrl.u32 %v514, 7
      %v516 = vsub.s32 0, %v515
      %v517 = vrot.slane %v502, %v516
      %v518 = vlaneseq
      %v519 = vshrl.u32 %v518, 7
      %v520 = vsub.s32 0, %v519
      %v521 = vrot.slane %v504, %v520
      %v522 = vlaneseq
      %v523 = vshrl.u32 %v522, 7
      %v524 = vsub.s32 0, %v523
      %v525 = vrot.slane %v487, %v524
      %v526 = vlaneseq
      %v527 = vshrl.u32 %v526, 7
      %v528 = vsub.s32 0, %v527
      %v529 = vrot.slane %v501, %v528
      %v530 = vlaneseq
      %v531 = vshrl.u32 %v530, 7
      %v532 = vsub.s32 0, %v531
      %v533 = vrot.slane %v503, %v532
      %v534 = vlaneseq
      %v535 = vshrl.u32 %v534, 7
      %v536 = vsub.s32 0, %v535
      %v537 = vrot.slane %v505, %v536
      %v546 = vadd.f32 %v341, %v509
      %v547 = vadd.f32 %v346, %v513
      %v548 = vadd.f32 %v351, %v517
      %v549 = vadd.f32 %v356, %v521
      %v550 = vadd.f32 %v361, %v525
      %v551 = vadd.f32 %v366, %v529
      %v552 = vadd.f32 %v371, %v533
      %v553 = vadd.f32 %v376, %v537
      %v554 = vld [vmem:[#allocation12] sm:$0x1]
      %v556 = vlaneseq
      %v557 = vshrl.u32 %v556, 7
      %v558 = vsub.s32 0, %v557
      %v559 = vrot.slane %v554, %v558
      %v561 = vadd.f32 %v546, %v559
      %v562 = vadd.f32 %v547, %v559
      %v563 = vadd.f32 %v548, %v559
      %v564 = vadd.f32 %v549, %v559
      %v565 = vadd.f32 %v550, %v559
      %v566 = vadd.f32 %v551, %v559
      %v567 = vadd.f32 %v552, %v559
      %v568 = vadd.f32 %v553, %v559
      %v569 = vtanh.pop %v561
      %v570 = vtanh.pop %v562
      %v571 = vtanh.pop %v563
      %v572 = vtanh.pop %v564
      %v573 = vtanh.pop %v565
      %v574 = vtanh.pop %v566
      %v575 = vtanh.pop %v567
      %v576 = vtanh.pop %v568
      %v577 = vld [vmem:[#allocation14] sm:$0x1]
      %v579 = vlaneseq
      %v580 = vshrl.u32 %v579, 7
      %v581 = vsub.s32 0, %v580
      %v582 = vrot.slane %v577, %v581
      %v584 = vmul.f32 %v569, %v582
      %v585 = vmul.f32 %v570, %v582
      %v586 = vmul.f32 %v571, %v582
      %v587 = vmul.f32 %v572, %v582
      %v588 = vmul.f32 %v573, %v582
      %v589 = vmul.f32 %v574, %v582
      %v590 = vmul.f32 %v575, %v582
      %v591 = vmul.f32 %v576, %v582
      %v592 = vsel %vm249, %v584, 0.0
      %593 = vadd.xlane.f32.xlu0 %v592
      %v594 = vpop.xlane.xlu0 %593
      %v595 = vsel %vm249, %v585, 0.0
      %596 = vadd.xlane.f32.xlu0 %v595
      %v597 = vpop.xlane.xlu0 %596
      %v598 = vsel %vm249, %v586, 0.0
      %599 = vadd.xlane.f32.xlu0 %v598
      %v600 = vpop.xlane.xlu0 %599
      %v601 = vsel %vm249, %v587, 0.0
      %602 = vadd.xlane.f32.xlu0 %v601
      %v603 = vpop.xlane.xlu0 %602
      %v604 = vsel %vm249, %v588, 0.0
      %605 = vadd.xlane.f32.xlu0 %v604
      %v606 = vpop.xlane.xlu0 %605
      %v607 = vsel %vm249, %v589, 0.0
      %608 = vadd.xlane.f32.xlu0 %v607
      %v609 = vpop.xlane.xlu0 %608
      %v610 = vsel %vm249, %v590, 0.0
      %611 = vadd.xlane.f32.xlu0 %v610
      %v612 = vpop.xlane.xlu0 %611
      %v613 = vsel %vm249, %v591, 0.0
      %614 = vadd.xlane.f32.xlu0 %v613
      %v615 = vpop.xlane.xlu0 %614
      %v624 = vlaneseq
      %v625 = vand.u32 %v624, 127
      %v626 = vlaneseq
      %v627 = vshrl.u32 %v626, 7
      %v628 = vsub.s32 %v625, %v627
      %v629 = vrot.slane %v594, %v628
      %v630 = vlaneseq
      %v631 = vshrl.u32 %v630, 7
      %v632 = vsub.s32 %v625, %v631
      %v633 = vrot.slane %v597, %v632
      %v634 = vlaneseq
      %v635 = vshrl.u32 %v634, 7
      %v636 = vsub.s32 %v625, %v635
      %v637 = vrot.slane %v600, %v636
      %v638 = vlaneseq
      %v639 = vshrl.u32 %v638, 7
      %v640 = vsub.s32 %v625, %v639
      %v641 = vrot.slane %v603, %v640
      %v642 = vlaneseq
      %v643 = vshrl.u32 %v642, 7
      %v644 = vsub.s32 %v625, %v643
      %v645 = vrot.slane %v606, %v644
      %v646 = vlaneseq
      %v647 = vshrl.u32 %v646, 7
      %v648 = vsub.s32 %v625, %v647
      %v649 = vrot.slane %v609, %v648
      %v650 = vlaneseq
      %v651 = vshrl.u32 %v650, 7
      %v652 = vsub.s32 %v625, %v651
      %v653 = vrot.slane %v612, %v652
      %v654 = vlaneseq
      %v655 = vshrl.u32 %v654, 7
      %v656 = vsub.s32 %v625, %v655
      %v657 = vrot.slane %v615, %v656
      %vm658 = vcmask 1041409
      %v659 = vsel %vm658, %v633, %v629
      %vm660 = vcmask 1042434
      %v661 = vsel %vm660, %v637, %v659
      %vm662 = vcmask 1043459
      %v663 = vsel %vm662, %v641, %v661
      %vm664 = vcmask 1044484
      %v665 = vsel %vm664, %v645, %v663
      %vm666 = vcmask 1045509
      %v667 = vsel %vm666, %v649, %v665
      %vm668 = vcmask 1046534
      %v669 = vsel %vm668, %v653, %v667
      %vm670 = vcmask 1047559
      %v671 = vsel %vm670, %v657, %v669
      %vm673 = vcmask 64512
      %v674 = vsel %vm673, %v671, -inf
      %675 = vmax.xlane.f32.xlu0 %v674
      %v676 = vpop.xlane.xlu0 %675
      %v678 = vlaneseq
      %v679 = vshrl.u32 %v678, 7
      %v680 = vsub.s32 0, %v679
      %v681 = vrot.slane %v676, %v680
      %v682 = vlaneseq
      %v683 = vshrl.u32 %v682, 7
      %v684 = vsub.s32 1, %v683
      %v685 = vrot.slane %v676, %v684
      %v686 = vlaneseq
      %v687 = vshrl.u32 %v686, 7
      %v688 = vsub.s32 2, %v687
      %v689 = vrot.slane %v676, %v688
      %v690 = vlaneseq
      %v691 = vshrl.u32 %v690, 7
      %v692 = vsub.s32 3, %v691
      %v693 = vrot.slane %v676, %v692
      %v694 = vlaneseq
      %v695 = vshrl.u32 %v694, 7
      %v696 = vsub.s32 4, %v695
      %v697 = vrot.slane %v676, %v696
      %v698 = vlaneseq
      %v699 = vshrl.u32 %v698, 7
      %v700 = vsub.s32 5, %v699
      %v701 = vrot.slane %v676, %v700
      %v702 = vlaneseq
      %v703 = vshrl.u32 %v702, 7
      %v704 = vsub.s32 6, %v703
      %v705 = vrot.slane %v676, %v704
      %v706 = vlaneseq
      %v707 = vshrl.u32 %v706, 7
      %v708 = vsub.s32 7, %v707
      %v709 = vrot.slane %v676, %v708
      %v718 = vsub.f32 %v594, %v681
      %v719 = vsub.f32 %v597, %v685
      %v720 = vsub.f32 %v600, %v689
      %v721 = vsub.f32 %v603, %v693
      %v722 = vsub.f32 %v606, %v697
      %v723 = vsub.f32 %v609, %v701
      %v724 = vsub.f32 %v612, %v705
      %v725 = vsub.f32 %v615, %v709
      %v726 = vmul.f32 %v718, 1.442695
      %v727 = vpow.pop %v726
      %v728 = vmul.f32 %v719, 1.442695
      %v729 = vpow.pop %v728
      %v730 = vmul.f32 %v720, 1.442695
      %v731 = vpow.pop %v730
      %v732 = vmul.f32 %v721, 1.442695
      %v733 = vpow.pop %v732
      %v734 = vmul.f32 %v722, 1.442695
      %v735 = vpow.pop %v734
      %v736 = vmul.f32 %v723, 1.442695
      %v737 = vpow.pop %v736
      %v738 = vmul.f32 %v724, 1.442695
      %v739 = vpow.pop %v738
      %v740 = vmul.f32 %v725, 1.442695
      %v741 = vpow.pop %v740
      %750 = vset.pattern.permute.xlu0 0
      %751 = vperm.xlu0 %750, %v727
      %v752 = vpop.permute.xlu0 %751
      %753 = vset.pattern.permute.xlu0 0
      %754 = vperm.xlu0 %753, %v729
      %v755 = vpop.permute.xlu0 %754
      %756 = vset.pattern.permute.xlu0 0
      %757 = vperm.xlu0 %756, %v731
      %v758 = vpop.permute.xlu0 %757
      %759 = vset.pattern.permute.xlu0 0
      %760 = vperm.xlu0 %759, %v733
      %v761 = vpop.permute.xlu0 %760
      %762 = vset.pattern.permute.xlu0 0
      %763 = vperm.xlu0 %762, %v735
      %v764 = vpop.permute.xlu0 %763
      %765 = vset.pattern.permute.xlu0 0
      %766 = vperm.xlu0 %765, %v737
      %v767 = vpop.permute.xlu0 %766
      %768 = vset.pattern.permute.xlu0 0
      %769 = vperm.xlu0 %768, %v739
      %v770 = vpop.permute.xlu0 %769
      %771 = vset.pattern.permute.xlu0 0
      %772 = vperm.xlu0 %771, %v741
      %v773 = vpop.permute.xlu0 %772
      %v774 = vlaneseq
      %v775 = vshrl.u32 %v774, 7
      %v776 = vsub.s32 %v625, %v775
      %v777 = vrot.slane %v752, %v776
      %v778 = vlaneseq
      %v779 = vshrl.u32 %v778, 7
      %v780 = vsub.s32 %v625, %v779
      %v781 = vrot.slane %v755, %v780
      %v782 = vlaneseq
      %v783 = vshrl.u32 %v782, 7
      %v784 = vsub.s32 %v625, %v783
      %v785 = vrot.slane %v758, %v784
      %v786 = vlaneseq
      %v787 = vshrl.u32 %v786, 7
      %v788 = vsub.s32 %v625, %v787
      %v789 = vrot.slane %v761, %v788
      %v790 = vlaneseq
      %v791 = vshrl.u32 %v790, 7
      %v792 = vsub.s32 %v625, %v791
      %v793 = vrot.slane %v764, %v792
      %v794 = vlaneseq
      %v795 = vshrl.u32 %v794, 7
      %v796 = vsub.s32 %v625, %v795
      %v797 = vrot.slane %v767, %v796
      %v798 = vlaneseq
      %v799 = vshrl.u32 %v798, 7
      %v800 = vsub.s32 %v625, %v799
      %v801 = vrot.slane %v770, %v800
      %v802 = vlaneseq
      %v803 = vshrl.u32 %v802, 7
      %v804 = vsub.s32 %v625, %v803
      %v805 = vrot.slane %v773, %v804
      %v806 = vsel %vm658, %v781, %v777
      %v807 = vsel %vm660, %v785, %v806
      %v808 = vsel %vm662, %v789, %v807
      %v809 = vsel %vm664, %v793, %v808
      %v810 = vsel %vm666, %v797, %v809
      %v811 = vsel %vm668, %v801, %v810
      %v812 = vsel %vm670, %v805, %v811
      %v814 = vsel %vm673, %v812, 0.0
      %815 = vadd.xlane.f32.xlu0 %v814
      %v816 = vpop.xlane.xlu0 %815
      %v817 = vrcp.pop %v816
      %v819 = vlaneseq
      %v820 = vshrl.u32 %v819, 7
      %v821 = vsub.s32 0, %v820
      %v822 = vrot.slane %v817, %v821
      %v823 = vlaneseq
      %v824 = vshrl.u32 %v823, 7
      %v825 = vsub.s32 1, %v824
      %v826 = vrot.slane %v817, %v825
      %v827 = vlaneseq
      %v828 = vshrl.u32 %v827, 7
      %v829 = vsub.s32 2, %v828
      %v830 = vrot.slane %v817, %v829
      %v831 = vlaneseq
      %v832 = vshrl.u32 %v831, 7
      %v833 = vsub.s32 3, %v832
      %v834 = vrot.slane %v817, %v833
      %v835 = vlaneseq
      %v836 = vshrl.u32 %v835, 7
      %v837 = vsub.s32 4, %v836
      %v838 = vrot.slane %v817, %v837
      %v839 = vlaneseq
      %v840 = vshrl.u32 %v839, 7
      %v841 = vsub.s32 5, %v840
      %v842 = vrot.slane %v817, %v841
      %v843 = vlaneseq
      %v844 = vshrl.u32 %v843, 7
      %v845 = vsub.s32 6, %v844
      %v846 = vrot.slane %v817, %v845
      %v847 = vlaneseq
      %v848 = vshrl.u32 %v847, 7
      %v849 = vsub.s32 7, %v848
      %v850 = vrot.slane %v817, %v849
      %v859 = vmul.f32 %v727, %v822
      %v860 = vmul.f32 %v729, %v826
      %v861 = vmul.f32 %v731, %v830
      %v862 = vmul.f32 %v733, %v834
      %v863 = vmul.f32 %v735, %v838
      %v864 = vmul.f32 %v737, %v842
      %v865 = vmul.f32 %v739, %v846
      %v866 = vmul.f32 %v741, %v850
      %868 = vset.pattern.permute.xlu0 0
      %869 = vperm.xlu0 %868, %v859
      %v870 = vpop.permute.xlu0 %869
      %v871 = vlaneseq
      %v872 = vshrl.u32 %v871, 7
      %v873 = vsub.s32 %v625, %v872
      %v874 = vrot.slane %v870, %v873
      %v875 = vsel %vm673, %v874, 0
      %877 = vmatprep.subr.mxu0 0.0
      %878 = vmatpush1.msra.mxu0 %v237
      %879 = vmatprep.subr.mxu0 0.0
      %880 = vmatpush1.msra.mxu0 0.0
      %881 = vmatprep.subr.mxu0 0.0
      %882 = vmatpush1.msra.mxu0 0.0
      %883 = vmatprep.subr.mxu0 0.0
      %884 = vmatpush1.msra.mxu0 0.0
      %885 = vmatprep.subr.mxu0 0.0
      %886 = vmatpush1.msra.mxu0 0.0
      %887 = vmatprep.subr.mxu0 0.0
      %888 = vmatpush1.msra.mxu0 0.0
      %889 = vmatprep.subr.mxu0 0.0
      %890 = vmatpush1.msra.mxu0 0.0
      %891 = vmatprep.subr.mxu0 0.0
      %892 = vmatpush1.msra.mxu0 0.0
      %893 = vmatprep.subr.mxu0 0.0
      %894 = vmatpush1.msra.mxu0 0.0
      %895 = vmatprep.subr.mxu0 0.0
      %896 = vmatpush1.msra.mxu0 0.0
      %897 = vmatprep.subr.mxu0 0.0
      %898 = vmatpush1.msra.mxu0 0.0
      %899 = vmatprep.subr.mxu0 0.0
      %900 = vmatpush1.msra.mxu0 0.0
      %901 = vmatprep.subr.mxu0 0.0
      %902 = vmatpush1.msra.mxu0 0.0
      %903 = vmatprep.subr.mxu0 0.0
      %904 = vmatpush1.msra.mxu0 0.0
      %905 = vmatprep.subr.mxu0 0.0
      %906 = vmatpush1.msra.mxu0 0.0
      %907 = vmatprep.subr.mxu0 0.0
      %908 = vmatpush1.msra.mxu0 0.0
      %909 = vmatprep.subr.mxu0 0.0
      %910 = vmatpush1.msra.mxu0 0.0
      %911 = vmatprep.subr.mxu0 0.0
      %912 = vmatpush1.msra.mxu0 0.0
      %913 = vmatprep.subr.mxu0 0.0
      %914 = vmatpush1.msra.mxu0 0.0
      %915 = vmatprep.subr.mxu0 0.0
      %916 = vmatpush1.msra.mxu0 0.0
      %917 = vmatprep.subr.mxu0 0.0
      %918 = vmatpush1.msra.mxu0 0.0
      %919 = vmatprep.subr.mxu0 0.0
      %920 = vmatpush1.msra.mxu0 0.0
      %921 = vmatprep.subr.mxu0 0.0
      %922 = vmatpush1.msra.mxu0 0.0
      %923 = vmatprep.subr.mxu0 0.0
      %924 = vmatpush1.msra.mxu0 0.0
      %925 = vmatprep.subr.mxu0 0.0
      %926 = vmatpush1.msra.mxu0 0.0
      %927 = vmatprep.subr.mxu0 0.0
      %928 = vmatpush1.msra.mxu0 0.0
      %929 = vmatprep.subr.mxu0 0.0
      %930 = vmatpush1.msra.mxu0 0.0
      %931 = vmatprep.subr.mxu0 0.0
      %932 = vmatpush1.msra.mxu0 0.0
      %933 = vmatprep.subr.mxu0 0.0
      %934 = vmatpush1.msra.mxu0 0.0
      %935 = vmatprep.subr.mxu0 0.0
      %936 = vmatpush1.msra.mxu0 0.0
      %937 = vmatprep.subr.mxu0 0.0
      %938 = vmatpush1.msra.mxu0 0.0
      %939 = vmatprep.subr.mxu0 0.0
      %940 = vmatpush1.msra.mxu0 0.0
      %941 = vmatprep.mubr.f32.mxu0 0.0
      %942 = vmatmul.mubr.f32.gmra.mrb[0].mxu0 %v875
      %v943 = vpop.f32.mrb[0].mxu0
      %v944 = vadd.f32 0.0, %v943
      %v945 = vpop.f32.mrb[0].mxu0
      %946 = vdwg.mxu0
      %948 = vset.pattern.permute.xlu0 0
      %949 = vperm.xlu0 %948, %v860
      %v950 = vpop.permute.xlu0 %949
      %v951 = vlaneseq
      %v952 = vshrl.u32 %v951, 7
      %v953 = vsub.s32 %v625, %v952
      %v954 = vrot.slane %v950, %v953
      %v955 = vsel %vm673, %v954, 0
      %957 = vmatprep.subr.mxu0 0.0
      %958 = vmatpush1.msra.mxu0 %v238
      %959 = vmatprep.subr.mxu0 0.0
      %960 = vmatpush1.msra.mxu0 0.0
      %961 = vmatprep.subr.mxu0 0.0
      %962 = vmatpush1.msra.mxu0 0.0
      %963 = vmatprep.subr.mxu0 0.0
      %964 = vmatpush1.msra.mxu0 0.0
      %965 = vmatprep.subr.mxu0 0.0
      %966 = vmatpush1.msra.mxu0 0.0
      %967 = vmatprep.subr.mxu0 0.0
      %968 = vmatpush1.msra.mxu0 0.0
      %969 = vmatprep.subr.mxu0 0.0
      %970 = vmatpush1.msra.mxu0 0.0
      %971 = vmatprep.subr.mxu0 0.0
      %972 = vmatpush1.msra.mxu0 0.0
      %973 = vmatprep.subr.mxu0 0.0
      %974 = vmatpush1.msra.mxu0 0.0
      %975 = vmatprep.subr.mxu0 0.0
      %976 = vmatpush1.msra.mxu0 0.0
      %977 = vmatprep.subr.mxu0 0.0
      %978 = vmatpush1.msra.mxu0 0.0
      %979 = vmatprep.subr.mxu0 0.0
      %980 = vmatpush1.msra.mxu0 0.0
      %981 = vmatprep.subr.mxu0 0.0
      %982 = vmatpush1.msra.mxu0 0.0
      %983 = vmatprep.subr.mxu0 0.0
      %984 = vmatpush1.msra.mxu0 0.0
      %985 = vmatprep.subr.mxu0 0.0
      %986 = vmatpush1.msra.mxu0 0.0
      %987 = vmatprep.subr.mxu0 0.0
      %988 = vmatpush1.msra.mxu0 0.0
      %989 = vmatprep.subr.mxu0 0.0
      %990 = vmatpush1.msra.mxu0 0.0
      %991 = vmatprep.subr.mxu0 0.0
      %992 = vmatpush1.msra.mxu0 0.0
      %993 = vmatprep.subr.mxu0 0.0
      %994 = vmatpush1.msra.mxu0 0.0
      %995 = vmatprep.subr.mxu0 0.0
      %996 = vmatpush1.msra.mxu0 0.0
      %997 = vmatprep.subr.mxu0 0.0
      %998 = vmatpush1.msra.mxu0 0.0
      %999 = vmatprep.subr.mxu0 0.0
      %1000 = vmatpush1.msra.mxu0 0.0
      %1001 = vmatprep.subr.mxu0 0.0
      %1002 = vmatpush1.msra.mxu0 0.0
      %1003 = vmatprep.subr.mxu0 0.0
      %1004 = vmatpush1.msra.mxu0 0.0
      %1005 = vmatprep.subr.mxu0 0.0
      %1006 = vmatpush1.msra.mxu0 0.0
      %1007 = vmatprep.subr.mxu0 0.0
      %1008 = vmatpush1.msra.mxu0 0.0
      %1009 = vmatprep.subr.mxu0 0.0
      %1010 = vmatpush1.msra.mxu0 0.0
      %1011 = vmatprep.subr.mxu0 0.0
      %1012 = vmatpush1.msra.mxu0 0.0
      %1013 = vmatprep.subr.mxu0 0.0
      %1014 = vmatpush1.msra.mxu0 0.0
      %1015 = vmatprep.subr.mxu0 0.0
      %1016 = vmatpush1.msra.mxu0 0.0
      %1017 = vmatprep.subr.mxu0 0.0
      %1018 = vmatpush1.msra.mxu0 0.0
      %1019 = vmatprep.subr.mxu0 0.0
      %1020 = vmatpush1.msra.mxu0 0.0
      %1021 = vmatprep.mubr.f32.mxu0 0.0
      %1022 = vmatmul.mubr.f32.gmra.mrb[0].mxu0 %v955
      %v1023 = vpop.f32.mrb[0].mxu0
      %v1024 = vadd.f32 0.0, %v1023
      %v1025 = vpop.f32.mrb[0].mxu0
      %1026 = vdwg.mxu0
      %1028 = vset.pattern.permute.xlu0 0
      %1029 = vperm.xlu0 %1028, %v861
      %v1030 = vpop.permute.xlu0 %1029
      %v1031 = vlaneseq
      %v1032 = vshrl.u32 %v1031, 7
      %v1033 = vsub.s32 %v625, %v1032
      %v1034 = vrot.slane %v1030, %v1033
      %v1035 = vsel %vm673, %v1034, 0
      %1037 = vmatprep.subr.mxu0 0.0
      %1038 = vmatpush1.msra.mxu0 %v239
      %1039 = vmatprep.subr.mxu0 0.0
      %1040 = vmatpush1.msra.mxu0 0.0
      %1041 = vmatprep.subr.mxu0 0.0
      %1042 = vmatpush1.msra.mxu0 0.0
      %1043 = vmatprep.subr.mxu0 0.0
      %1044 = vmatpush1.msra.mxu0 0.0
      %1045 = vmatprep.subr.mxu0 0.0
      %1046 = vmatpush1.msra.mxu0 0.0
      %1047 = vmatprep.subr.mxu0 0.0
      %1048 = vmatpush1.msra.mxu0 0.0
      %1049 = vmatprep.subr.mxu0 0.0
      %1050 = vmatpush1.msra.mxu0 0.0
      %1051 = vmatprep.subr.mxu0 0.0
      %1052 = vmatpush1.msra.mxu0 0.0
      %1053 = vmatprep.subr.mxu0 0.0
      %1054 = vmatpush1.msra.mxu0 0.0
      %1055 = vmatprep.subr.mxu0 0.0
      %1056 = vmatpush1.msra.mxu0 0.0
      %1057 = vmatprep.subr.mxu0 0.0
      %1058 = vmatpush1.msra.mxu0 0.0
      %1059 = vmatprep.subr.mxu0 0.0
      %1060 = vmatpush1.msra.mxu0 0.0
      %1061 = vmatprep.subr.mxu0 0.0
      %1062 = vmatpush1.msra.mxu0 0.0
      %1063 = vmatprep.subr.mxu0 0.0
      %1064 = vmatpush1.msra.mxu0 0.0
      %1065 = vmatprep.subr.mxu0 0.0
      %1066 = vmatpush1.msra.mxu0 0.0
      %1067 = vmatprep.subr.mxu0 0.0
      %1068 = vmatpush1.msra.mxu0 0.0
      %1069 = vmatprep.subr.mxu0 0.0
      %1070 = vmatpush1.msra.mxu0 0.0
      %1071 = vmatprep.subr.mxu0 0.0
      %1072 = vmatpush1.msra.mxu0 0.0
      %1073 = vmatprep.subr.mxu0 0.0
      %1074 = vmatpush1.msra.mxu0 0.0
      %1075 = vmatprep.subr.mxu0 0.0
      %1076 = vmatpush1.msra.mxu0 0.0
      %1077 = vmatprep.subr.mxu0 0.0
      %1078 = vmatpush1.msra.mxu0 0.0
      %1079 = vmatprep.subr.mxu0 0.0
      %1080 = vmatpush1.msra.mxu0 0.0
      %1081 = vmatprep.subr.mxu0 0.0
      %1082 = vmatpush1.msra.mxu0 0.0
      %1083 = vmatprep.subr.mxu0 0.0
      %1084 = vmatpush1.msra.mxu0 0.0
      %1085 = vmatprep.subr.mxu0 0.0
      %1086 = vmatpush1.msra.mxu0 0.0
      %1087 = vmatprep.subr.mxu0 0.0
      %1088 = vmatpush1.msra.mxu0 0.0
      %1089 = vmatprep.subr.mxu0 0.0
      %1090 = vmatpush1.msra.mxu0 0.0
      %1091 = vmatprep.subr.mxu0 0.0
      %1092 = vmatpush1.msra.mxu0 0.0
      %1093 = vmatprep.subr.mxu0 0.0
      %1094 = vmatpush1.msra.mxu0 0.0
      %1095 = vmatprep.subr.mxu0 0.0
      %1096 = vmatpush1.msra.mxu0 0.0
      %1097 = vmatprep.subr.mxu0 0.0
      %1098 = vmatpush1.msra.mxu0 0.0
      %1099 = vmatprep.subr.mxu0 0.0
      %1100 = vmatpush1.msra.mxu0 0.0
      %1101 = vmatprep.mubr.f32.mxu0 0.0
      %1102 = vmatmul.mubr.f32.gmra.mrb[0].mxu0 %v1035
      %v1103 = vpop.f32.mrb[0].mxu0
      %v1104 = vadd.f32 0.0, %v1103
      %v1105 = vpop.f32.mrb[0].mxu0
      %1106 = vdwg.mxu0
      %1108 = vset.pattern.permute.xlu0 0
      %1109 = vperm.xlu0 %1108, %v862
      %v1110 = vpop.permute.xlu0 %1109
      %v1111 = vlaneseq
      %v1112 = vshrl.u32 %v1111, 7
      %v1113 = vsub.s32 %v625, %v1112
      %v1114 = vrot.slane %v1110, %v1113
      %v1115 = vsel %vm673, %v1114, 0
      %1117 = vmatprep.subr.mxu0 0.0
      %1118 = vmatpush1.msra.mxu0 %v240
      %1119 = vmatprep.subr.mxu0 0.0
      %1120 = vmatpush1.msra.mxu0 0.0
      %1121 = vmatprep.subr.mxu0 0.0
      %1122 = vmatpush1.msra.mxu0 0.0
      %1123 = vmatprep.subr.mxu0 0.0
      %1124 = vmatpush1.msra.mxu0 0.0
      %1125 = vmatprep.subr.mxu0 0.0
      %1126 = vmatpush1.msra.mxu0 0.0
      %1127 = vmatprep.subr.mxu0 0.0
      %1128 = vmatpush1.msra.mxu0 0.0
      %1129 = vmatprep.subr.mxu0 0.0
      %1130 = vmatpush1.msra.mxu0 0.0
      %1131 = vmatprep.subr.mxu0 0.0
      %1132 = vmatpush1.msra.mxu0 0.0
      %1133 = vmatprep.subr.mxu0 0.0
      %1134 = vmatpush1.msra.mxu0 0.0
      %1135 = vmatprep.subr.mxu0 0.0
      %1136 = vmatpush1.msra.mxu0 0.0
      %1137 = vmatprep.subr.mxu0 0.0
      %1138 = vmatpush1.msra.mxu0 0.0
      %1139 = vmatprep.subr.mxu0 0.0
      %1140 = vmatpush1.msra.mxu0 0.0
      %1141 = vmatprep.subr.mxu0 0.0
      %1142 = vmatpush1.msra.mxu0 0.0
      %1143 = vmatprep.subr.mxu0 0.0
      %1144 = vmatpush1.msra.mxu0 0.0
      %1145 = vmatprep.subr.mxu0 0.0
      %1146 = vmatpush1.msra.mxu0 0.0
      %1147 = vmatprep.subr.mxu0 0.0
      %1148 = vmatpush1.msra.mxu0 0.0
      %1149 = vmatprep.subr.mxu0 0.0
      %1150 = vmatpush1.msra.mxu0 0.0
      %1151 = vmatprep.subr.mxu0 0.0
      %1152 = vmatpush1.msra.mxu0 0.0
      %1153 = vmatprep.subr.mxu0 0.0
      %1154 = vmatpush1.msra.mxu0 0.0
      %1155 = vmatprep.subr.mxu0 0.0
      %1156 = vmatpush1.msra.mxu0 0.0
      %1157 = vmatprep.subr.mxu0 0.0
      %1158 = vmatpush1.msra.mxu0 0.0
      %1159 = vmatprep.subr.mxu0 0.0
      %1160 = vmatpush1.msra.mxu0 0.0
      %1161 = vmatprep.subr.mxu0 0.0
      %1162 = vmatpush1.msra.mxu0 0.0
      %1163 = vmatprep.subr.mxu0 0.0
      %1164 = vmatpush1.msra.mxu0 0.0
      %1165 = vmatprep.subr.mxu0 0.0
      %1166 = vmatpush1.msra.mxu0 0.0
      %1167 = vmatprep.subr.mxu0 0.0
      %1168 = vmatpush1.msra.mxu0 0.0
      %1169 = vmatprep.subr.mxu0 0.0
      %1170 = vmatpush1.msra.mxu0 0.0
      %1171 = vmatprep.subr.mxu0 0.0
      %1172 = vmatpush1.msra.mxu0 0.0
      %1173 = vmatprep.subr.mxu0 0.0
      %1174 = vmatpush1.msra.mxu0 0.0
      %1175 = vmatprep.subr.mxu0 0.0
      %1176 = vmatpush1.msra.mxu0 0.0
      %1177 = vmatprep.subr.mxu0 0.0
      %1178 = vmatpush1.msra.mxu0 0.0
      %1179 = vmatprep.subr.mxu0 0.0
      %1180 = vmatpush1.msra.mxu0 0.0
      %1181 = vmatprep.mubr.f32.mxu0 0.0
      %1182 = vmatmul.mubr.f32.gmra.mrb[0].mxu0 %v1115
      %v1183 = vpop.f32.mrb[0].mxu0
      %v1184 = vadd.f32 0.0, %v1183
      %v1185 = vpop.f32.mrb[0].mxu0
      %1186 = vdwg.mxu0
      %1188 = vset.pattern.permute.xlu0 0
      %1189 = vperm.xlu0 %1188, %v863
      %v1190 = vpop.permute.xlu0 %1189
      %v1191 = vlaneseq
      %v1192 = vshrl.u32 %v1191, 7
      %v1193 = vsub.s32 %v625, %v1192
      %v1194 = vrot.slane %v1190, %v1193
      %v1195 = vsel %vm673, %v1194, 0
      %1197 = vmatprep.subr.mxu0 0.0
      %1198 = vmatpush1.msra.mxu0 %v241
      %1199 = vmatprep.subr.mxu0 0.0
      %1200 = vmatpush1.msra.mxu0 0.0
      %1201 = vmatprep.subr.mxu0 0.0
      %1202 = vmatpush1.msra.mxu0 0.0
      %1203 = vmatprep.subr.mxu0 0.0
      %1204 = vmatpush1.msra.mxu0 0.0
      %1205 = vmatprep.subr.mxu0 0.0
      %1206 = vmatpush1.msra.mxu0 0.0
      %1207 = vmatprep.subr.mxu0 0.0
      %1208 = vmatpush1.msra.mxu0 0.0
      %1209 = vmatprep.subr.mxu0 0.0
      %1210 = vmatpush1.msra.mxu0 0.0
      %1211 = vmatprep.subr.mxu0 0.0
      %1212 = vmatpush1.msra.mxu0 0.0
      %1213 = vmatprep.subr.mxu0 0.0
      %1214 = vmatpush1.msra.mxu0 0.0
      %1215 = vmatprep.subr.mxu0 0.0
      %1216 = vmatpush1.msra.mxu0 0.0
      %1217 = vmatprep.subr.mxu0 0.0
      %1218 = vmatpush1.msra.mxu0 0.0
      %1219 = vmatprep.subr.mxu0 0.0
      %1220 = vmatpush1.msra.mxu0 0.0
      %1221 = vmatprep.subr.mxu0 0.0
      %1222 = vmatpush1.msra.mxu0 0.0
      %1223 = vmatprep.subr.mxu0 0.0
      %1224 = vmatpush1.msra.mxu0 0.0
      %1225 = vmatprep.subr.mxu0 0.0
      %1226 = vmatpush1.msra.mxu0 0.0
      %1227 = vmatprep.subr.mxu0 0.0
      %1228 = vmatpush1.msra.mxu0 0.0
      %1229 = vmatprep.subr.mxu0 0.0
      %1230 = vmatpush1.msra.mxu0 0.0
      %1231 = vmatprep.subr.mxu0 0.0
      %1232 = vmatpush1.msra.mxu0 0.0
      %1233 = vmatprep.subr.mxu0 0.0
      %1234 = vmatpush1.msra.mxu0 0.0
      %1235 = vmatprep.subr.mxu0 0.0
      %1236 = vmatpush1.msra.mxu0 0.0
      %1237 = vmatprep.subr.mxu0 0.0
      %1238 = vmatpush1.msra.mxu0 0.0
      %1239 = vmatprep.subr.mxu0 0.0
      %1240 = vmatpush1.msra.mxu0 0.0
      %1241 = vmatprep.subr.mxu0 0.0
      %1242 = vmatpush1.msra.mxu0 0.0
      %1243 = vmatprep.subr.mxu0 0.0
      %1244 = vmatpush1.msra.mxu0 0.0
      %1245 = vmatprep.subr.mxu0 0.0
      %1246 = vmatpush1.msra.mxu0 0.0
      %1247 = vmatprep.subr.mxu0 0.0
      %1248 = vmatpush1.msra.mxu0 0.0
      %1249 = vmatprep.subr.mxu0 0.0
      %1250 = vmatpush1.msra.mxu0 0.0
      %1251 = vmatprep.subr.mxu0 0.0
      %1252 = vmatpush1.msra.mxu0 0.0
      %1253 = vmatprep.subr.mxu0 0.0
      %1254 = vmatpush1.msra.mxu0 0.0
      %1255 = vmatprep.subr.mxu0 0.0
      %1256 = vmatpush1.msra.mxu0 0.0
      %1257 = vmatprep.subr.mxu0 0.0
      %1258 = vmatpush1.msra.mxu0 0.0
      %1259 = vmatprep.subr.mxu0 0.0
      %1260 = vmatpush1.msra.mxu0 0.0
      %1261 = vmatprep.mubr.f32.mxu0 0.0
      %1262 = vmatmul.mubr.f32.gmra.mrb[0].mxu0 %v1195
      %v1263 = vpop.f32.mrb[0].mxu0
      %v1264 = vadd.f32 0.0, %v1263
      %v1265 = vpop.f32.mrb[0].mxu0
      %1266 = vdwg.mxu0
      %1268 = vset.pattern.permute.xlu0 0
      %1269 = vperm.xlu0 %1268, %v864
      %v1270 = vpop.permute.xlu0 %1269
      %v1271 = vlaneseq
      %v1272 = vshrl.u32 %v1271, 7
      %v1273 = vsub.s32 %v625, %v1272
      %v1274 = vrot.slane %v1270, %v1273
      %v1275 = vsel %vm673, %v1274, 0
      %1277 = vmatprep.subr.mxu0 0.0
      %1278 = vmatpush1.msra.mxu0 %v242
      %1279 = vmatprep.subr.mxu0 0.0
      %1280 = vmatpush1.msra.mxu0 0.0
      %1281 = vmatprep.subr.mxu0 0.0
      %1282 = vmatpush1.msra.mxu0 0.0
      %1283 = vmatprep.subr.mxu0 0.0
      %1284 = vmatpush1.msra.mxu0 0.0
      %1285 = vmatprep.subr.mxu0 0.0
      %1286 = vmatpush1.msra.mxu0 0.0
      %1287 = vmatprep.subr.mxu0 0.0
      %1288 = vmatpush1.msra.mxu0 0.0
      %1289 = vmatprep.subr.mxu0 0.0
      %1290 = vmatpush1.msra.mxu0 0.0
      %1291 = vmatprep.subr.mxu0 0.0
      %1292 = vmatpush1.msra.mxu0 0.0
      %1293 = vmatprep.subr.mxu0 0.0
      %1294 = vmatpush1.msra.mxu0 0.0
      %1295 = vmatprep.subr.mxu0 0.0
      %1296 = vmatpush1.msra.mxu0 0.0
      %1297 = vmatprep.subr.mxu0 0.0
      %1298 = vmatpush1.msra.mxu0 0.0
      %1299 = vmatprep.subr.mxu0 0.0
      %1300 = vmatpush1.msra.mxu0 0.0
      %1301 = vmatprep.subr.mxu0 0.0
      %1302 = vmatpush1.msra.mxu0 0.0
      %1303 = vmatprep.subr.mxu0 0.0
      %1304 = vmatpush1.msra.mxu0 0.0
      %1305 = vmatprep.subr.mxu0 0.0
      %1306 = vmatpush1.msra.mxu0 0.0
      %1307 = vmatprep.subr.mxu0 0.0
      %1308 = vmatpush1.msra.mxu0 0.0
      %1309 = vmatprep.subr.mxu0 0.0
      %1310 = vmatpush1.msra.mxu0 0.0
      %1311 = vmatprep.subr.mxu0 0.0
      %1312 = vmatpush1.msra.mxu0 0.0
      %1313 = vmatprep.subr.mxu0 0.0
      %1314 = vmatpush1.msra.mxu0 0.0
      %1315 = vmatprep.subr.mxu0 0.0
      %1316 = vmatpush1.msra.mxu0 0.0
      %1317 = vmatprep.subr.mxu0 0.0
      %1318 = vmatpush1.msra.mxu0 0.0
      %1319 = vmatprep.subr.mxu0 0.0
      %1320 = vmatpush1.msra.mxu0 0.0
      %1321 = vmatprep.subr.mxu0 0.0
      %1322 = vmatpush1.msra.mxu0 0.0
      %1323 = vmatprep.subr.mxu0 0.0
      %1324 = vmatpush1.msra.mxu0 0.0
      %1325 = vmatprep.subr.mxu0 0.0
      %1326 = vmatpush1.msra.mxu0 0.0
      %1327 = vmatprep.subr.mxu0 0.0
      %1328 = vmatpush1.msra.mxu0 0.0
      %1329 = vmatprep.subr.mxu0 0.0
      %1330 = vmatpush1.msra.mxu0 0.0
      %1331 = vmatprep.subr.mxu0 0.0
      %1332 = vmatpush1.msra.mxu0 0.0
      %1333 = vmatprep.subr.mxu0 0.0
      %1334 = vmatpush1.msra.mxu0 0.0
      %1335 = vmatprep.subr.mxu0 0.0
      %1336 = vmatpush1.msra.mxu0 0.0
      %1337 = vmatprep.subr.mxu0 0.0
      %1338 = vmatpush1.msra.mxu0 0.0
      %1339 = vmatprep.subr.mxu0 0.0
      %1340 = vmatpush1.msra.mxu0 0.0
      %1341 = vmatprep.mubr.f32.mxu0 0.0
      %1342 = vmatmul.mubr.f32.gmra.mrb[0].mxu0 %v1275
      %v1343 = vpop.f32.mrb[0].mxu0
      %v1344 = vadd.f32 0.0, %v1343
      %v1345 = vpop.f32.mrb[0].mxu0
      %1346 = vdwg.mxu0
      %1348 = vset.pattern.permute.xlu0 0
      %1349 = vperm.xlu0 %1348, %v865
      %v1350 = vpop.permute.xlu0 %1349
      %v1351 = vlaneseq
      %v1352 = vshrl.u32 %v1351, 7
      %v1353 = vsub.s32 %v625, %v1352
      %v1354 = vrot.slane %v1350, %v1353
      %v1355 = vsel %vm673, %v1354, 0
      %1357 = vmatprep.subr.mxu0 0.0
      %1358 = vmatpush1.msra.mxu0 %v243
      %1359 = vmatprep.subr.mxu0 0.0
      %1360 = vmatpush1.msra.mxu0 0.0
      %1361 = vmatprep.subr.mxu0 0.0
      %1362 = vmatpush1.msra.mxu0 0.0
      %1363 = vmatprep.subr.mxu0 0.0
      %1364 = vmatpush1.msra.mxu0 0.0
      %1365 = vmatprep.subr.mxu0 0.0
      %1366 = vmatpush1.msra.mxu0 0.0
      %1367 = vmatprep.subr.mxu0 0.0
      %1368 = vmatpush1.msra.mxu0 0.0
      %1369 = vmatprep.subr.mxu0 0.0
      %1370 = vmatpush1.msra.mxu0 0.0
      %1371 = vmatprep.subr.mxu0 0.0
      %1372 = vmatpush1.msra.mxu0 0.0
      %1373 = vmatprep.subr.mxu0 0.0
      %1374 = vmatpush1.msra.mxu0 0.0
      %1375 = vmatprep.subr.mxu0 0.0
      %1376 = vmatpush1.msra.mxu0 0.0
      %1377 = vmatprep.subr.mxu0 0.0
      %1378 = vmatpush1.msra.mxu0 0.0
      %1379 = vmatprep.subr.mxu0 0.0
      %1380 = vmatpush1.msra.mxu0 0.0
      %1381 = vmatprep.subr.mxu0 0.0
      %1382 = vmatpush1.msra.mxu0 0.0
      %1383 = vmatprep.subr.mxu0 0.0
      %1384 = vmatpush1.msra.mxu0 0.0
      %1385 = vmatprep.subr.mxu0 0.0
      %1386 = vmatpush1.msra.mxu0 0.0
      %1387 = vmatprep.subr.mxu0 0.0
      %1388 = vmatpush1.msra.mxu0 0.0
      %1389 = vmatprep.subr.mxu0 0.0
      %1390 = vmatpush1.msra.mxu0 0.0
      %1391 = vmatprep.subr.mxu0 0.0
      %1392 = vmatpush1.msra.mxu0 0.0
      %1393 = vmatprep.subr.mxu0 0.0
      %1394 = vmatpush1.msra.mxu0 0.0
      %1395 = vmatprep.subr.mxu0 0.0
      %1396 = vmatpush1.msra.mxu0 0.0
      %1397 = vmatprep.subr.mxu0 0.0
      %1398 = vmatpush1.msra.mxu0 0.0
      %1399 = vmatprep.subr.mxu0 0.0
      %1400 = vmatpush1.msra.mxu0 0.0
      %1401 = vmatprep.subr.mxu0 0.0
      %1402 = vmatpush1.msra.mxu0 0.0
      %1403 = vmatprep.subr.mxu0 0.0
      %1404 = vmatpush1.msra.mxu0 0.0
      %1405 = vmatprep.subr.mxu0 0.0
      %1406 = vmatpush1.msra.mxu0 0.0
      %1407 = vmatprep.subr.mxu0 0.0
      %1408 = vmatpush1.msra.mxu0 0.0
      %1409 = vmatprep.subr.mxu0 0.0
      %1410 = vmatpush1.msra.mxu0 0.0
      %1411 = vmatprep.subr.mxu0 0.0
      %1412 = vmatpush1.msra.mxu0 0.0
      %1413 = vmatprep.subr.mxu0 0.0
      %1414 = vmatpush1.msra.mxu0 0.0
      %1415 = vmatprep.subr.mxu0 0.0
      %1416 = vmatpush1.msra.mxu0 0.0
      %1417 = vmatprep.subr.mxu0 0.0
      %1418 = vmatpush1.msra.mxu0 0.0
      %1419 = vmatprep.subr.mxu0 0.0
      %1420 = vmatpush1.msra.mxu0 0.0
      %1421 = vmatprep.mubr.f32.mxu0 0.0
      %1422 = vmatmul.mubr.f32.gmra.mrb[0].mxu0 %v1355
      %v1423 = vpop.f32.mrb[0].mxu0
      %v1424 = vadd.f32 0.0, %v1423
      %v1425 = vpop.f32.mrb[0].mxu0
      %1426 = vdwg.mxu0
      %1428 = vset.pattern.permute.xlu0 0
      %1429 = vperm.xlu0 %1428, %v866
      %v1430 = vpop.permute.xlu0 %1429
      %v1431 = vlaneseq
      %v1432 = vshrl.u32 %v1431, 7
      %v1433 = vsub.s32 %v625, %v1432
      %v1434 = vrot.slane %v1430, %v1433
      %v1435 = vsel %vm673, %v1434, 0
      %1437 = vmatprep.subr.mxu0 0.0
      %1438 = vmatpush1.msra.mxu0 %v244
      %1439 = vmatprep.subr.mxu0 0.0
      %1440 = vmatpush1.msra.mxu0 0.0
      %1441 = vmatprep.subr.mxu0 0.0
      %1442 = vmatpush1.msra.mxu0 0.0
      %1443 = vmatprep.subr.mxu0 0.0
      %1444 = vmatpush1.msra.mxu0 0.0
      %1445 = vmatprep.subr.mxu0 0.0
      %1446 = vmatpush1.msra.mxu0 0.0
      %1447 = vmatprep.subr.mxu0 0.0
      %1448 = vmatpush1.msra.mxu0 0.0
      %1449 = vmatprep.subr.mxu0 0.0
      %1450 = vmatpush1.msra.mxu0 0.0
      %1451 = vmatprep.subr.mxu0 0.0
      %1452 = vmatpush1.msra.mxu0 0.0
      %1453 = vmatprep.subr.mxu0 0.0
      %1454 = vmatpush1.msra.mxu0 0.0
      %1455 = vmatprep.subr.mxu0 0.0
      %1456 = vmatpush1.msra.mxu0 0.0
      %1457 = vmatprep.subr.mxu0 0.0
      %1458 = vmatpush1.msra.mxu0 0.0
      %1459 = vmatprep.subr.mxu0 0.0
      %1460 = vmatpush1.msra.mxu0 0.0
      %1461 = vmatprep.subr.mxu0 0.0
      %1462 = vmatpush1.msra.mxu0 0.0
      %1463 = vmatprep.subr.mxu0 0.0
      %1464 = vmatpush1.msra.mxu0 0.0
      %1465 = vmatprep.subr.mxu0 0.0
      %1466 = vmatpush1.msra.mxu0 0.0
      %1467 = vmatprep.subr.mxu0 0.0
      %1468 = vmatpush1.msra.mxu0 0.0
      %1469 = vmatprep.subr.mxu0 0.0
      %1470 = vmatpush1.msra.mxu0 0.0
      %1471 = vmatprep.subr.mxu0 0.0
      %1472 = vmatpush1.msra.mxu0 0.0
      %1473 = vmatprep.subr.mxu0 0.0
      %1474 = vmatpush1.msra.mxu0 0.0
      %1475 = vmatprep.subr.mxu0 0.0
      %1476 = vmatpush1.msra.mxu0 0.0
      %1477 = vmatprep.subr.mxu0 0.0
      %1478 = vmatpush1.msra.mxu0 0.0
      %1479 = vmatprep.subr.mxu0 0.0
      %1480 = vmatpush1.msra.mxu0 0.0
      %1481 = vmatprep.subr.mxu0 0.0
      %1482 = vmatpush1.msra.mxu0 0.0
      %1483 = vmatprep.subr.mxu0 0.0
      %1484 = vmatpush1.msra.mxu0 0.0
      %1485 = vmatprep.subr.mxu0 0.0
      %1486 = vmatpush1.msra.mxu0 0.0
      %1487 = vmatprep.subr.mxu0 0.0
      %1488 = vmatpush1.msra.mxu0 0.0
      %1489 = vmatprep.subr.mxu0 0.0
      %1490 = vmatpush1.msra.mxu0 0.0
      %1491 = vmatprep.subr.mxu0 0.0
      %1492 = vmatpush1.msra.mxu0 0.0
      %1493 = vmatprep.subr.mxu0 0.0
      %1494 = vmatpush1.msra.mxu0 0.0
      %1495 = vmatprep.subr.mxu0 0.0
      %1496 = vmatpush1.msra.mxu0 0.0
      %1497 = vmatprep.subr.mxu0 0.0
      %1498 = vmatpush1.msra.mxu0 0.0
      %1499 = vmatprep.subr.mxu0 0.0
      %1500 = vmatpush1.msra.mxu0 0.0
      %1501 = vmatprep.mubr.f32.mxu0 0.0
      %1502 = vmatmul.mubr.f32.gmra.mrb[0].mxu0 %v1435
      %v1503 = vpop.f32.mrb[0].mxu0
      %v1504 = vadd.f32 0.0, %v1503
      %v1505 = vpop.f32.mrb[0].mxu0
      %1506 = vdwg.mxu0
      %v1507 = vld [vmem:[#allocation15] sm:$0xff]
      %v1508 = vld [vmem:[#allocation15 + $0x8] sm:$0xff]
      %v1509 = vld [vmem:[#allocation17] sm:$0xff]
      %v1510 = vld [vmem:[#allocation17 + $0x8] sm:$0xff]
      %v1511 = vld [vmem:[#allocation17 + $0x10] sm:$0xff]
      %v1512 = vld [vmem:[#allocation17 + $0x18] sm:$0xff]
      %v1521 = vrot.slane %v1024, 7
      %v1522 = vsel %vm658, %v1521, %v944
      %v1523 = vrot.slane %v1104, 6
      %v1524 = vsel %vm660, %v1523, %v1522
      %v1525 = vrot.slane %v1184, 5
      %v1526 = vsel %vm662, %v1525, %v1524
      %v1527 = vrot.slane %v1264, 4
      %v1528 = vsel %vm664, %v1527, %v1526
      %v1529 = vrot.slane %v1344, 3
      %v1530 = vsel %vm666, %v1529, %v1528
      %v1531 = vrot.slane %v1424, 2
      %v1532 = vsel %vm668, %v1531, %v1530
      %v1533 = vrot.slane %v1504, 1
      %v1534 = vsel %vm670, %v1533, %v1532
      %v1535 = vsel %vm249, %v1534, 0
      %1537 = vmatprep.subr.mxu0 0.0
      %1538 = vmatpush1.msra.mxu0 %v1509
      %1539 = vmatprep.subr.mxu0 0.0
      %1540 = vmatpush1.msra.mxu0 %v1510
      %1541 = vmatprep.subr.mxu0 0.0
      %1542 = vmatpush1.msra.mxu0 %v1511
      %1543 = vmatprep.subr.mxu0 0.0
      %1544 = vmatpush1.msra.mxu0 %v1512
      %1545 = vmatprep.subr.mxu0 0.0
      %1546 = vmatpush1.msra.mxu0 0.0
      %1547 = vmatprep.subr.mxu0 0.0
      %1548 = vmatpush1.msra.mxu0 0.0
      %1549 = vmatprep.subr.mxu0 0.0
      %1550 = vmatpush1.msra.mxu0 0.0
      %1551 = vmatprep.subr.mxu0 0.0
      %1552 = vmatpush1.msra.mxu0 0.0
      %1553 = vmatprep.subr.mxu0 0.0
      %1554 = vmatpush1.msra.mxu0 0.0
      %1555 = vmatprep.subr.mxu0 0.0
      %1556 = vmatpush1.msra.mxu0 0.0
      %1557 = vmatprep.subr.mxu0 0.0
      %1558 = vmatpush1.msra.mxu0 0.0
      %1559 = vmatprep.subr.mxu0 0.0
      %1560 = vmatpush1.msra.mxu0 0.0
      %1561 = vmatprep.subr.mxu0 0.0
      %1562 = vmatpush1.msra.mxu0 0.0
      %1563 = vmatprep.subr.mxu0 0.0
      %1564 = vmatpush1.msra.mxu0 0.0
      %1565 = vmatprep.subr.mxu0 0.0
      %1566 = vmatpush1.msra.mxu0 0.0
      %1567 = vmatprep.subr.mxu0 0.0
      %1568 = vmatpush1.msra.mxu0 0.0
      %1569 = vmatprep.subr.mxu0 0.0
      %1570 = vmatpush1.msra.mxu0 0.0
      %1571 = vmatprep.subr.mxu0 0.0
      %1572 = vmatpush1.msra.mxu0 0.0
      %1573 = vmatprep.subr.mxu0 0.0
      %1574 = vmatpush1.msra.mxu0 0.0
      %1575 = vmatprep.subr.mxu0 0.0
      %1576 = vmatpush1.msra.mxu0 0.0
      %1577 = vmatprep.subr.mxu0 0.0
      %1578 = vmatpush1.msra.mxu0 0.0
      %1579 = vmatprep.subr.mxu0 0.0
      %1580 = vmatpush1.msra.mxu0 0.0
      %1581 = vmatprep.subr.mxu0 0.0
      %1582 = vmatpush1.msra.mxu0 0.0
      %1583 = vmatprep.subr.mxu0 0.0
      %1584 = vmatpush1.msra.mxu0 0.0
      %1585 = vmatprep.subr.mxu0 0.0
      %1586 = vmatpush1.msra.mxu0 0.0
      %1587 = vmatprep.subr.mxu0 0.0
      %1588 = vmatpush1.msra.mxu0 0.0
      %1589 = vmatprep.subr.mxu0 0.0
      %1590 = vmatpush1.msra.mxu0 0.0
      %1591 = vmatprep.subr.mxu0 0.0
      %1592 = vmatpush1.msra.mxu0 0.0
      %1593 = vmatprep.subr.mxu0 0.0
      %1594 = vmatpush1.msra.mxu0 0.0
      %1595 = vmatprep.subr.mxu0 0.0
      %1596 = vmatpush1.msra.mxu0 0.0
      %1597 = vmatprep.subr.mxu0 0.0
      %1598 = vmatpush1.msra.mxu0 0.0
      %1599 = vmatprep.subr.mxu0 0.0
      %1600 = vmatpush1.msra.mxu0 0.0
      %1601 = vmatprep.mubr.f32.mxu0 0.0
      %1602 = vmatmul.mubr.f32.gmra.mrb[0].mxu0 %v1535
      %v1603 = vpop.f32.mrb[0].mxu0
      %v1604 = vadd.f32 0.0, %v1603
      %v1605 = vpop.f32.mrb[0].mxu0
      %1606 = vdwg.mxu0
      %vm1607 = vcmask 130048
      %v1609 = vsel %vm1607, %v235, 0
      %1611 = vmatprep.subr.mxu0 0.0
      %1612 = vmatpush1.msra.mxu0 %v1507
      %1613 = vmatprep.subr.mxu0 0.0
      %1614 = vmatpush1.msra.mxu0 %v1508
      %1615 = vmatprep.subr.mxu0 0.0
      %1616 = vmatpush1.msra.mxu0 0.0
      %1617 = vmatprep.subr.mxu0 0.0
      %1618 = vmatpush1.msra.mxu0 0.0
      %1619 = vmatprep.subr.mxu0 0.0
      %1620 = vmatpush1.msra.mxu0 0.0
      %1621 = vmatprep.subr.mxu0 0.0
      %1622 = vmatpush1.msra.mxu0 0.0
      %1623 = vmatprep.subr.mxu0 0.0
      %1624 = vmatpush1.msra.mxu0 0.0
      %1625 = vmatprep.subr.mxu0 0.0
      %1626 = vmatpush1.msra.mxu0 0.0
      %1627 = vmatprep.subr.mxu0 0.0
      %1628 = vmatpush1.msra.mxu0 0.0
      %1629 = vmatprep.subr.mxu0 0.0
      %1630 = vmatpush1.msra.mxu0 0.0
      %1631 = vmatprep.subr.mxu0 0.0
      %1632 = vmatpush1.msra.mxu0 0.0
      %1633 = vmatprep.subr.mxu0 0.0
      %1634 = vmatpush1.msra.mxu0 0.0
      %1635 = vmatprep.subr.mxu0 0.0
      %1636 = vmatpush1.msra.mxu0 0.0
      %1637 = vmatprep.subr.mxu0 0.0
      %1638 = vmatpush1.msra.mxu0 0.0
      %1639 = vmatprep.subr.mxu0 0.0
      %1640 = vmatpush1.msra.mxu0 0.0
      %1641 = vmatprep.subr.mxu0 0.0
      %1642 = vmatpush1.msra.mxu0 0.0
      %1643 = vmatprep.subr.mxu0 0.0
      %1644 = vmatpush1.msra.mxu0 0.0
      %1645 = vmatprep.subr.mxu0 0.0
      %1646 = vmatpush1.msra.mxu0 0.0
      %1647 = vmatprep.subr.mxu0 0.0
      %1648 = vmatpush1.msra.mxu0 0.0
      %1649 = vmatprep.subr.mxu0 0.0
      %1650 = vmatpush1.msra.mxu0 0.0
      %1651 = vmatprep.subr.mxu0 0.0
      %1652 = vmatpush1.msra.mxu0 0.0
      %1653 = vmatprep.subr.mxu0 0.0
      %1654 = vmatpush1.msra.mxu0 0.0
      %1655 = vmatprep.subr.mxu0 0.0
      %1656 = vmatpush1.msra.mxu0 0.0
      %1657 = vmatprep.subr.mxu0 0.0
      %1658 = vmatpush1.msra.mxu0 0.0
      %1659 = vmatprep.subr.mxu0 0.0
      %1660 = vmatpush1.msra.mxu0 0.0
      %1661 = vmatprep.subr.mxu0 0.0
      %1662 = vmatpush1.msra.mxu0 0.0
      %1663 = vmatprep.subr.mxu0 0.0
      %1664 = vmatpush1.msra.mxu0 0.0
      %1665 = vmatprep.subr.mxu0 0.0
      %1666 = vmatpush1.msra.mxu0 0.0
      %1667 = vmatprep.subr.mxu0 0.0
      %1668 = vmatpush1.msra.mxu0 0.0
      %1669 = vmatprep.subr.mxu0 0.0
      %1670 = vmatpush1.msra.mxu0 0.0
      %1671 = vmatprep.subr.mxu0 0.0
      %1672 = vmatpush1.msra.mxu0 0.0
      %1673 = vmatprep.subr.mxu0 0.0
      %1674 = vmatpush1.msra.mxu0 0.0
      %1675 = vmatprep.mubr.f32.mxu0 0.0
      %1676 = vmatmul.mubr.f32.gmra.mrb[0].mxu0 %v1609
      %v1677 = vpop.f32.mrb[0].mxu0
      %v1678 = vadd.f32 %v1604, %v1677
      %v1679 = vpop.f32.mrb[0].mxu0
      %1680 = vdwg.mxu0
      %v1681 = vld [vmem:[#allocation20] sm:$0x1]
      %v1683 = vlaneseq
      %v1684 = vshrl.u32 %v1683, 7
      %v1685 = vsub.s32 0, %v1684
      %v1686 = vrot.slane %v1681, %v1685
      %v1688 = vadd.f32 %v1678, %v1686
      %v1689 = vld [vmem:[#allocation18] sm:$0xff]
      %v1690 = vld [vmem:[#allocation18 + $0x8] sm:$0xff]
      %v1691 = vld [vmem:[#allocation18 + $0x10] sm:$0xff]
      %v1692 = vld [vmem:[#allocation18 + $0x18] sm:$0xff]
      %v1693 = vld [vmem:[#allocation21] sm:$0x1]
      %v1695 = vlaneseq
      %v1696 = vshrl.u32 %v1695, 7
      %v1697 = vsub.s32 0, %v1696
      %v1698 = vrot.slane %v1693, %v1697
      %1700 = vmatprep.subr.mxu0 0.0
      %1701 = vmatpush1.msra.mxu0 %v1689
      %1702 = vmatprep.subr.mxu0 0.0
      %1703 = vmatpush1.msra.mxu0 %v1690
      %1704 = vmatprep.subr.mxu0 0.0
      %1705 = vmatpush1.msra.mxu0 %v1691
      %1706 = vmatprep.subr.mxu0 0.0
      %1707 = vmatpush1.msra.mxu0 %v1692
      %1708 = vmatprep.subr.mxu0 0.0
      %1709 = vmatpush1.msra.mxu0 0.0
      %1710 = vmatprep.subr.mxu0 0.0
      %1711 = vmatpush1.msra.mxu0 0.0
      %1712 = vmatprep.subr.mxu0 0.0
      %1713 = vmatpush1.msra.mxu0 0.0
      %1714 = vmatprep.subr.mxu0 0.0
      %1715 = vmatpush1.msra.mxu0 0.0
      %1716 = vmatprep.subr.mxu0 0.0
      %1717 = vmatpush1.msra.mxu0 0.0
      %1718 = vmatprep.subr.mxu0 0.0
      %1719 = vmatpush1.msra.mxu0 0.0
      %1720 = vmatprep.subr.mxu0 0.0
      %1721 = vmatpush1.msra.mxu0 0.0
      %1722 = vmatprep.subr.mxu0 0.0
      %1723 = vmatpush1.msra.mxu0 0.0
      %1724 = vmatprep.subr.mxu0 0.0
      %1725 = vmatpush1.msra.mxu0 0.0
      %1726 = vmatprep.subr.mxu0 0.0
      %1727 = vmatpush1.msra.mxu0 0.0
      %1728 = vmatprep.subr.mxu0 0.0
      %1729 = vmatpush1.msra.mxu0 0.0
      %1730 = vmatprep.subr.mxu0 0.0
      %1731 = vmatpush1.msra.mxu0 0.0
      %1732 = vmatprep.subr.mxu0 0.0
      %1733 = vmatpush1.msra.mxu0 0.0
      %1734 = vmatprep.subr.mxu0 0.0
      %1735 = vmatpush1.msra.mxu0 0.0
      %1736 = vmatprep.subr.mxu0 0.0
      %1737 = vmatpush1.msra.mxu0 0.0
      %1738 = vmatprep.subr.mxu0 0.0
      %1739 = vmatpush1.msra.mxu0 0.0
      %1740 = vmatprep.subr.mxu0 0.0
      %1741 = vmatpush1.msra.mxu0 0.0
      %1742 = vmatprep.subr.mxu0 0.0
      %1743 = vmatpush1.msra.mxu0 0.0
      %1744 = vmatprep.subr.mxu0 0.0
      %1745 = vmatpush1.msra.mxu0 0.0
      %1746 = vmatprep.subr.mxu0 0.0
      %1747 = vmatpush1.msra.mxu0 0.0
      %1748 = vmatprep.subr.mxu0 0.0
      %1749 = vmatpush1.msra.mxu0 0.0
      %1750 = vmatprep.subr.mxu0 0.0
      %1751 = vmatpush1.msra.mxu0 0.0
      %1752 = vmatprep.subr.mxu0 0.0
      %1753 = vmatpush1.msra.mxu0 0.0
      %1754 = vmatprep.subr.mxu0 0.0
      %1755 = vmatpush1.msra.mxu0 0.0
      %1756 = vmatprep.subr.mxu0 0.0
      %1757 = vmatpush1.msra.mxu0 0.0
      %1758 = vmatprep.subr.mxu0 0.0
      %1759 = vmatpush1.msra.mxu0 0.0
      %1760 = vmatprep.subr.mxu0 0.0
      %1761 = vmatpush1.msra.mxu0 0.0
      %1762 = vmatprep.subr.mxu0 0.0
      %1763 = vmatpush1.msra.mxu0 0.0
      %1764 = vmatprep.mubr.f32.mxu0 0.0
      %1765 = vmatmul.mubr.f32.gmra.mrb[0].mxu0 %v384
      %v1766 = vpop.f32.mrb[0].mxu0
      %v1767 = vadd.f32 %v1698, %v1766
      %v1768 = vpop.f32.mrb[0].mxu0
      %1769 = vdwg.mxu0
      %s1770 = scalar_lea.vmem [#allocation15], 16
      %v1771 = vld [vmem:[%s1770] sm:$0xff]
      %v1772 = vld [vmem:[%s1770 + $0x8] sm:$0xff]
      %s1773 = scalar_lea.vmem [#allocation17], 32
      %v1774 = vld [vmem:[%s1773] sm:$0xff]
      %v1775 = vld [vmem:[%s1773 + $0x8] sm:$0xff]
      %v1776 = vld [vmem:[%s1773 + $0x10] sm:$0xff]
      %v1777 = vld [vmem:[%s1773 + $0x18] sm:$0xff]
      %1778 = vmatprep.subr.mxu0 0.0
      %1779 = vmatpush1.msra.mxu0 %v1774
      %1780 = vmatprep.subr.mxu0 0.0
      %1781 = vmatpush1.msra.mxu0 %v1775
      %1782 = vmatprep.subr.mxu0 0.0
      %1783 = vmatpush1.msra.mxu0 %v1776
      %1784 = vmatprep.subr.mxu0 0.0
      %1785 = vmatpush1.msra.mxu0 %v1777
      %1786 = vmatprep.subr.mxu0 0.0
      %1787 = vmatpush1.msra.mxu0 0.0
      %1788 = vmatprep.subr.mxu0 0.0
      %1789 = vmatpush1.msra.mxu0 0.0
      %1790 = vmatprep.subr.mxu0 0.0
      %1791 = vmatpush1.msra.mxu0 0.0
      %1792 = vmatprep.subr.mxu0 0.0
      %1793 = vmatpush1.msra.mxu0 0.0
      %1794 = vmatprep.subr.mxu0 0.0
      %1795 = vmatpush1.msra.mxu0 0.0
      %1796 = vmatprep.subr.mxu0 0.0
      %1797 = vmatpush1.msra.mxu0 0.0
      %1798 = vmatprep.subr.mxu0 0.0
      %1799 = vmatpush1.msra.mxu0 0.0
      %1800 = vmatprep.subr.mxu0 0.0
      %1801 = vmatpush1.msra.mxu0 0.0
      %1802 = vmatprep.subr.mxu0 0.0
      %1803 = vmatpush1.msra.mxu0 0.0
      %1804 = vmatprep.subr.mxu0 0.0
      %1805 = vmatpush1.msra.mxu0 0.0
      %1806 = vmatprep.subr.mxu0 0.0
      %1807 = vmatpush1.msra.mxu0 0.0
      %1808 = vmatprep.subr.mxu0 0.0
      %1809 = vmatpush1.msra.mxu0 0.0
      %1810 = vmatprep.subr.mxu0 0.0
      %1811 = vmatpush1.msra.mxu0 0.0
      %1812 = vmatprep.subr.mxu0 0.0
      %1813 = vmatpush1.msra.mxu0 0.0
      %1814 = vmatprep.subr.mxu0 0.0
      %1815 = vmatpush1.msra.mxu0 0.0
      %1816 = vmatprep.subr.mxu0 0.0
      %1817 = vmatpush1.msra.mxu0 0.0
      %1818 = vmatprep.subr.mxu0 0.0
      %1819 = vmatpush1.msra.mxu0 0.0
      %1820 = vmatprep.subr.mxu0 0.0
      %1821 = vmatpush1.msra.mxu0 0.0
      %1822 = vmatprep.subr.mxu0 0.0
      %1823 = vmatpush1.msra.mxu0 0.0
      %1824 = vmatprep.subr.mxu0 0.0
      %1825 = vmatpush1.msra.mxu0 0.0
      %1826 = vmatprep.subr.mxu0 0.0
      %1827 = vmatpush1.msra.mxu0 0.0
      %1828 = vmatprep.subr.mxu0 0.0
      %1829 = vmatpush1.msra.mxu0 0.0
      %1830 = vmatprep.subr.mxu0 0.0
      %1831 = vmatpush1.msra.mxu0 0.0
      %1832 = vmatprep.subr.mxu0 0.0
      %1833 = vmatpush1.msra.mxu0 0.0
      %1834 = vmatprep.subr.mxu0 0.0
      %1835 = vmatpush1.msra.mxu0 0.0
      %1836 = vmatprep.subr.mxu0 0.0
      %1837 = vmatpush1.msra.mxu0 0.0
      %1838 = vmatprep.subr.mxu0 0.0
      %1839 = vmatpush1.msra.mxu0 0.0
      %1840 = vmatprep.subr.mxu0 0.0
      %1841 = vmatpush1.msra.mxu0 0.0
      %1842 = vmatprep.mubr.f32.mxu0 0.0
      %1843 = vmatmul.mubr.f32.gmra.mrb[0].mxu0 %v1535
      %v1844 = vpop.f32.mrb[0].mxu0
      %v1845 = vadd.f32 0.0, %v1844
      %v1846 = vpop.f32.mrb[0].mxu0
      %1847 = vdwg.mxu0
      %1848 = vmatprep.subr.mxu0 0.0
      %1849 = vmatpush1.msra.mxu0 %v1771
      %1850 = vmatprep.subr.mxu0 0.0
      %1851 = vmatpush1.msra.mxu0 %v1772
      %1852 = vmatprep.subr.mxu0 0.0
      %1853 = vmatpush1.msra.mxu0 0.0
      %1854 = vmatprep.subr.mxu0 0.0
      %1855 = vmatpush1.msra.mxu0 0.0
      %1856 = vmatprep.subr.mxu0 0.0
      %1857 = vmatpush1.msra.mxu0 0.0
      %1858 = vmatprep.subr.mxu0 0.0
      %1859 = vmatpush1.msra.mxu0 0.0
      %1860 = vmatprep.subr.mxu0 0.0
      %1861 = vmatpush1.msra.mxu0 0.0
      %1862 = vmatprep.subr.mxu0 0.0
      %1863 = vmatpush1.msra.mxu0 0.0
      %1864 = vmatprep.subr.mxu0 0.0
      %1865 = vmatpush1.msra.mxu0 0.0
      %1866 = vmatprep.subr.mxu0 0.0
      %1867 = vmatpush1.msra.mxu0 0.0
      %1868 = vmatprep.subr.mxu0 0.0
      %1869 = vmatpush1.msra.mxu0 0.0
      %1870 = vmatprep.subr.mxu0 0.0
      %1871 = vmatpush1.msra.mxu0 0.0
      %1872 = vmatprep.subr.mxu0 0.0
      %1873 = vmatpush1.msra.mxu0 0.0
      %1874 = vmatprep.subr.mxu0 0.0
      %1875 = vmatpush1.msra.mxu0 0.0
      %1876 = vmatprep.subr.mxu0 0.0
      %1877 = vmatpush1.msra.mxu0 0.0
      %1878 = vmatprep.subr.mxu0 0.0
      %1879 = vmatpush1.msra.mxu0 0.0
      %1880 = vmatprep.subr.mxu0 0.0
      %1881 = vmatpush1.msra.mxu0 0.0
      %1882 = vmatprep.subr.mxu0 0.0
      %1883 = vmatpush1.msra.mxu0 0.0
      %1884 = vmatprep.subr.mxu0 0.0
      %1885 = vmatpush1.msra.mxu0 0.0
      %1886 = vmatprep.subr.mxu0 0.0
      %1887 = vmatpush1.msra.mxu0 0.0
      %1888 = vmatprep.subr.mxu0 0.0
      %1889 = vmatpush1.msra.mxu0 0.0
      %1890 = vmatprep.subr.mxu0 0.0
      %1891 = vmatpush1.msra.mxu0 0.0
      %1892 = vmatprep.subr.mxu0 0.0
      %1893 = vmatpush1.msra.mxu0 0.0
      %1894 = vmatprep.subr.mxu0 0.0
      %1895 = vmatpush1.msra.mxu0 0.0
      %1896 = vmatprep.subr.mxu0 0.0
      %1897 = vmatpush1.msra.mxu0 0.0
      %1898 = vmatprep.subr.mxu0 0.0
      %1899 = vmatpush1.msra.mxu0 0.0
      %1900 = vmatprep.subr.mxu0 0.0
      %1901 = vmatpush1.msra.mxu0 0.0
      %1902 = vmatprep.subr.mxu0 0.0
      %1903 = vmatpush1.msra.mxu0 0.0
      %1904 = vmatprep.subr.mxu0 0.0
      %1905 = vmatpush1.msra.mxu0 0.0
      %1906 = vmatprep.subr.mxu0 0.0
      %1907 = vmatpush1.msra.mxu0 0.0
      %1908 = vmatprep.subr.mxu0 0.0
      %1909 = vmatpush1.msra.mxu0 0.0
      %1910 = vmatprep.subr.mxu0 0.0
      %1911 = vmatpush1.msra.mxu0 0.0
      %1912 = vmatprep.mubr.f32.mxu0 0.0
      %1913 = vmatmul.mubr.f32.gmra.mrb[0].mxu0 %v1609
      %v1914 = vpop.f32.mrb[0].mxu0
      %v1915 = vadd.f32 %v1845, %v1914
      %v1916 = vpop.f32.mrb[0].mxu0
      %1917 = vdwg.mxu0
      %s1918 = scalar_lea.vmem [#allocation20], 1
      %v1919 = vld [vmem:[%s1918] sm:$0x1]
      %v1921 = vlaneseq
      %v1922 = vshrl.u32 %v1921, 7
      %v1923 = vsub.s32 0, %v1922
      %v1924 = vrot.slane %v1919, %v1923
      %v1926 = vadd.f32 %v1915, %v1924
      %s1927 = scalar_lea.vmem [#allocation18], 32
      %v1928 = vld [vmem:[%s1927] sm:$0xff]
      %v1929 = vld [vmem:[%s1927 + $0x8] sm:$0xff]
      %v1930 = vld [vmem:[%s1927 + $0x10] sm:$0xff]
      %v1931 = vld [vmem:[%s1927 + $0x18] sm:$0xff]
      %s1932 = scalar_lea.vmem [#allocation21], 1
      %v1933 = vld [vmem:[%s1932] sm:$0x1]
      %v1935 = vlaneseq
      %v1936 = vshrl.u32 %v1935, 7
      %v1937 = vsub.s32 0, %v1936
      %v1938 = vrot.slane %v1933, %v1937
      %1940 = vmatprep.subr.mxu0 0.0
      %1941 = vmatpush1.msra.mxu0 %v1928
      %1942 = vmatprep.subr.mxu0 0.0
      %1943 = vmatpush1.msra.mxu0 %v1929
      %1944 = vmatprep.subr.mxu0 0.0
      %1945 = vmatpush1.msra.mxu0 %v1930
      %1946 = vmatprep.subr.mxu0 0.0
      %1947 = vmatpush1.msra.mxu0 %v1931
      %1948 = vmatprep.subr.mxu0 0.0
      %1949 = vmatpush1.msra.mxu0 0.0
      %1950 = vmatprep.subr.mxu0 0.0
      %1951 = vmatpush1.msra.mxu0 0.0
      %1952 = vmatprep.subr.mxu0 0.0
      %1953 = vmatpush1.msra.mxu0 0.0
      %1954 = vmatprep.subr.mxu0 0.0
      %1955 = vmatpush1.msra.mxu0 0.0
      %1956 = vmatprep.subr.mxu0 0.0
      %1957 = vmatpush1.msra.mxu0 0.0
      %1958 = vmatprep.subr.mxu0 0.0
      %1959 = vmatpush1.msra.mxu0 0.0
      %1960 = vmatprep.subr.mxu0 0.0
      %1961 = vmatpush1.msra.mxu0 0.0
      %1962 = vmatprep.subr.mxu0 0.0
      %1963 = vmatpush1.msra.mxu0 0.0
      %1964 = vmatprep.subr.mxu0 0.0
      %1965 = vmatpush1.msra.mxu0 0.0
      %1966 = vmatprep.subr.mxu0 0.0
      %1967 = vmatpush1.msra.mxu0 0.0
      %1968 = vmatprep.subr.mxu0 0.0
      %1969 = vmatpush1.msra.mxu0 0.0
      %1970 = vmatprep.subr.mxu0 0.0
      %1971 = vmatpush1.msra.mxu0 0.0
      %1972 = vmatprep.subr.mxu0 0.0
      %1973 = vmatpush1.msra.mxu0 0.0
      %1974 = vmatprep.subr.mxu0 0.0
      %1975 = vmatpush1.msra.mxu0 0.0
      %1976 = vmatprep.subr.mxu0 0.0
      %1977 = vmatpush1.msra.mxu0 0.0
      %1978 = vmatprep.subr.mxu0 0.0
      %1979 = vmatpush1.msra.mxu0 0.0
      %1980 = vmatprep.subr.mxu0 0.0
      %1981 = vmatpush1.msra.mxu0 0.0
      %1982 = vmatprep.subr.mxu0 0.0
      %1983 = vmatpush1.msra.mxu0 0.0
      %1984 = vmatprep.subr.mxu0 0.0
      %1985 = vmatpush1.msra.mxu0 0.0
      %1986 = vmatprep.subr.mxu0 0.0
      %1987 = vmatpush1.msra.mxu0 0.0
      %1988 = vmatprep.subr.mxu0 0.0
      %1989 = vmatpush1.msra.mxu0 0.0
      %1990 = vmatprep.subr.mxu0 0.0
      %1991 = vmatpush1.msra.mxu0 0.0
      %1992 = vmatprep.subr.mxu0 0.0
      %1993 = vmatpush1.msra.mxu0 0.0
      %1994 = vmatprep.subr.mxu0 0.0
      %1995 = vmatpush1.msra.mxu0 0.0
      %1996 = vmatprep.subr.mxu0 0.0
      %1997 = vmatpush1.msra.mxu0 0.0
      %1998 = vmatprep.subr.mxu0 0.0
      %1999 = vmatpush1.msra.mxu0 0.0
      %2000 = vmatprep.subr.mxu0 0.0
      %2001 = vmatpush1.msra.mxu0 0.0
      %2002 = vmatprep.subr.mxu0 0.0
      %2003 = vmatpush1.msra.mxu0 0.0
      %2004 = vmatprep.mubr.f32.mxu0 0.0
      %2005 = vmatmul.mubr.f32.gmra.mrb[0].mxu0 %v384
      %v2006 = vpop.f32.mrb[0].mxu0
      %v2007 = vadd.f32 %v1938, %v2006
      %v2008 = vpop.f32.mrb[0].mxu0
      %2009 = vdwg.mxu0
      %s2010 = scalar_lea.vmem [#allocation15], 32
      %v2011 = vld [vmem:[%s2010] sm:$0xff]
      %v2012 = vld [vmem:[%s2010 + $0x8] sm:$0xff]
      %s2013 = scalar_lea.vmem [#allocation17], 64
      %v2014 = vld [vmem:[%s2013] sm:$0xff]
      %v2015 = vld [vmem:[%s2013 + $0x8] sm:$0xff]
      %v2016 = vld [vmem:[%s2013 + $0x10] sm:$0xff]
      %v2017 = vld [vmem:[%s2013 + $0x18] sm:$0xff]
      %2018 = vmatprep.subr.mxu0 0.0
      %2019 = vmatpush1.msra.mxu0 %v2014
      %2020 = vmatprep.subr.mxu0 0.0
      %2021 = vmatpush1.msra.mxu0 %v2015
      %2022 = vmatprep.subr.mxu0 0.0
      %2023 = vmatpush1.msra.mxu0 %v2016
      %2024 = vmatprep.subr.mxu0 0.0
      %2025 = vmatpush1.msra.mxu0 %v2017
      %2026 = vmatprep.subr.mxu0 0.0
      %2027 = vmatpush1.msra.mxu0 0.0
      %2028 = vmatprep.subr.mxu0 0.0
      %2029 = vmatpush1.msra.mxu0 0.0
      %2030 = vmatprep.subr.mxu0 0.0
      %2031 = vmatpush1.msra.mxu0 0.0
      %2032 = vmatprep.subr.mxu0 0.0
      %2033 = vmatpush1.msra.mxu0 0.0
      %2034 = vmatprep.subr.mxu0 0.0
      %2035 = vmatpush1.msra.mxu0 0.0
      %2036 = vmatprep.subr.mxu0 0.0
      %2037 = vmatpush1.msra.mxu0 0.0
      %2038 = vmatprep.subr.mxu0 0.0
      %2039 = vmatpush1.msra.mxu0 0.0
      %2040 = vmatprep.subr.mxu0 0.0
      %2041 = vmatpush1.msra.mxu0 0.0
      %2042 = vmatprep.subr.mxu0 0.0
      %2043 = vmatpush1.msra.mxu0 0.0
      %2044 = vmatprep.subr.mxu0 0.0
      %2045 = vmatpush1.msra.mxu0 0.0
      %2046 = vmatprep.subr.mxu0 0.0
      %2047 = vmatpush1.msra.mxu0 0.0
      %2048 = vmatprep.subr.mxu0 0.0
      %2049 = vmatpush1.msra.mxu0 0.0
      %2050 = vmatprep.subr.mxu0 0.0
      %2051 = vmatpush1.msra.mxu0 0.0
      %2052 = vmatprep.subr.mxu0 0.0
      %2053 = vmatpush1.msra.mxu0 0.0
      %2054 = vmatprep.subr.mxu0 0.0
      %2055 = vmatpush1.msra.mxu0 0.0
      %2056 = vmatprep.subr.mxu0 0.0
      %2057 = vmatpush1.msra.mxu0 0.0
      %2058 = vmatprep.subr.mxu0 0.0
      %2059 = vmatpush1.msra.mxu0 0.0
      %2060 = vmatprep.subr.mxu0 0.0
      %2061 = vmatpush1.msra.mxu0 0.0
      %2062 = vmatprep.subr.mxu0 0.0
      %2063 = vmatpush1.msra.mxu0 0.0
      %2064 = vmatprep.subr.mxu0 0.0
      %2065 = vmatpush1.msra.mxu0 0.0
      %2066 = vmatprep.subr.mxu0 0.0
      %2067 = vmatpush1.msra.mxu0 0.0
      %2068 = vmatprep.subr.mxu0 0.0
      %2069 = vmatpush1.msra.mxu0 0.0
      %2070 = vmatprep.subr.mxu0 0.0
      %2071 = vmatpush1.msra.mxu0 0.0
      %2072 = vmatprep.subr.mxu0 0.0
      %2073 = vmatpush1.msra.mxu0 0.0
      %2074 = vmatprep.subr.mxu0 0.0
      %2075 = vmatpush1.msra.mxu0 0.0
      %2076 = vmatprep.subr.mxu0 0.0
      %2077 = vmatpush1.msra.mxu0 0.0
      %2078 = vmatprep.subr.mxu0 0.0
      %2079 = vmatpush1.msra.mxu0 0.0
      %2080 = vmatprep.subr.mxu0 0.0
      %2081 = vmatpush1.msra.mxu0 0.0
      %2082 = vmatprep.mubr.f32.mxu0 0.0
      %2083 = vmatmul.mubr.f32.gmra.mrb[0].mxu0 %v1535
      %v2084 = vpop.f32.mrb[0].mxu0
      %v2085 = vadd.f32 0.0, %v2084
      %v2086 = vpop.f32.mrb[0].mxu0
      %2087 = vdwg.mxu0
      %2088 = vmatprep.subr.mxu0 0.0
      %2089 = vmatpush1.msra.mxu0 %v2011
      %2090 = vmatprep.subr.mxu0 0.0
      %2091 = vmatpush1.msra.mxu0 %v2012
      %2092 = vmatprep.subr.mxu0 0.0
      %2093 = vmatpush1.msra.mxu0 0.0
      %2094 = vmatprep.subr.mxu0 0.0
      %2095 = vmatpush1.msra.mxu0 0.0
      %2096 = vmatprep.subr.mxu0 0.0
      %2097 = vmatpush1.msra.mxu0 0.0
      %2098 = vmatprep.subr.mxu0 0.0
      %2099 = vmatpush1.msra.mxu0 0.0
      %2100 = vmatprep.subr.mxu0 0.0
      %2101 = vmatpush1.msra.mxu0 0.0
      %2102 = vmatprep.subr.mxu0 0.0
      %2103 = vmatpush1.msra.mxu0 0.0
      %2104 = vmatprep.subr.mxu0 0.0
      %2105 = vmatpush1.msra.mxu0 0.0
      %2106 = vmatprep.subr.mxu0 0.0
      %2107 = vmatpush1.msra.mxu0 0.0
      %2108 = vmatprep.subr.mxu0 0.0
      %2109 = vmatpush1.msra.mxu0 0.0
      %2110 = vmatprep.subr.mxu0 0.0
      %2111 = vmatpush1.msra.mxu0 0.0
      %2112 = vmatprep.subr.mxu0 0.0
      %2113 = vmatpush1.msra.mxu0 0.0
      %2114 = vmatprep.subr.mxu0 0.0
      %2115 = vmatpush1.msra.mxu0 0.0
      %2116 = vmatprep.subr.mxu0 0.0
      %2117 = vmatpush1.msra.mxu0 0.0
      %2118 = vmatprep.subr.mxu0 0.0
      %2119 = vmatpush1.msra.mxu0 0.0
      %2120 = vmatprep.subr.mxu0 0.0
      %2121 = vmatpush1.msra.mxu0 0.0
      %2122 = vmatprep.subr.mxu0 0.0
      %2123 = vmatpush1.msra.mxu0 0.0
      %2124 = vmatprep.subr.mxu0 0.0
      %2125 = vmatpush1.msra.mxu0 0.0
      %2126 = vmatprep.subr.mxu0 0.0
      %2127 = vmatpush1.msra.mxu0 0.0
      %2128 = vmatprep.subr.mxu0 0.0
      %2129 = vmatpush1.msra.mxu0 0.0
      %2130 = vmatprep.subr.mxu0 0.0
      %2131 = vmatpush1.msra.mxu0 0.0
      %2132 = vmatprep.subr.mxu0 0.0
      %2133 = vmatpush1.msra.mxu0 0.0
      %2134 = vmatprep.subr.mxu0 0.0
      %2135 = vmatpush1.msra.mxu0 0.0
      %2136 = vmatprep.subr.mxu0 0.0
      %2137 = vmatpush1.msra.mxu0 0.0
      %2138 = vmatprep.subr.mxu0 0.0
      %2139 = vmatpush1.msra.mxu0 0.0
      %2140 = vmatprep.subr.mxu0 0.0
      %2141 = vmatpush1.msra.mxu0 0.0
      %2142 = vmatprep.subr.mxu0 0.0
      %2143 = vmatpush1.msra.mxu0 0.0
      %2144 = vmatprep.subr.mxu0 0.0
      %2145 = vmatpush1.msra.mxu0 0.0
      %2146 = vmatprep.subr.mxu0 0.0
      %2147 = vmatpush1.msra.mxu0 0.0
      %2148 = vmatprep.subr.mxu0 0.0
      %2149 = vmatpush1.msra.mxu0 0.0
      %2150 = vmatprep.subr.mxu0 0.0
      %2151 = vmatpush1.msra.mxu0 0.0
      %2152 = vmatprep.mubr.f32.mxu0 0.0
      %2153 = vmatmul.mubr.f32.gmra.mrb[0].mxu0 %v1609
      %v2154 = vpop.f32.mrb[0].mxu0
      %v2155 = vadd.f32 %v2085, %v2154
      %v2156 = vpop.f32.mrb[0].mxu0
      %2157 = vdwg.mxu0
      %s2158 = scalar_lea.vmem [#allocation20], 2
      %v2159 = vld [vmem:[%s2158] sm:$0x1]
      %v2161 = vlaneseq
      %v2162 = vshrl.u32 %v2161, 7
      %v2163 = vsub.s32 0, %v2162
      %v2164 = vrot.slane %v2159, %v2163
      %v2166 = vadd.f32 %v2155, %v2164
      %s2167 = scalar_lea.vmem [#allocation18], 64
      %v2168 = vld [vmem:[%s2167] sm:$0xff]
      %v2169 = vld [vmem:[%s2167 + $0x8] sm:$0xff]
      %v2170 = vld [vmem:[%s2167 + $0x10] sm:$0xff]
      %v2171 = vld [vmem:[%s2167 + $0x18] sm:$0xff]
      %s2172 = scalar_lea.vmem [#allocation21], 2
      %v2173 = vld [vmem:[%s2172] sm:$0x1]
      %v2175 = vlaneseq
      %v2176 = vshrl.u32 %v2175, 7
      %v2177 = vsub.s32 0, %v2176
      %v2178 = vrot.slane %v2173, %v2177
      %2180 = vmatprep.subr.mxu0 0.0
      %2181 = vmatpush1.msra.mxu0 %v2168
      %2182 = vmatprep.subr.mxu0 0.0
      %2183 = vmatpush1.msra.mxu0 %v2169
      %2184 = vmatprep.subr.mxu0 0.0
      %2185 = vmatpush1.msra.mxu0 %v2170
      %2186 = vmatprep.subr.mxu0 0.0
      %2187 = vmatpush1.msra.mxu0 %v2171
      %2188 = vmatprep.subr.mxu0 0.0
      %2189 = vmatpush1.msra.mxu0 0.0
      %2190 = vmatprep.subr.mxu0 0.0
      %2191 = vmatpush1.msra.mxu0 0.0
      %2192 = vmatprep.subr.mxu0 0.0
      %2193 = vmatpush1.msra.mxu0 0.0
      %2194 = vmatprep.subr.mxu0 0.0
      %2195 = vmatpush1.msra.mxu0 0.0
      %2196 = vmatprep.subr.mxu0 0.0
      %2197 = vmatpush1.msra.mxu0 0.0
      %2198 = vmatprep.subr.mxu0 0.0
      %2199 = vmatpush1.msra.mxu0 0.0
      %2200 = vmatprep.subr.mxu0 0.0
      %2201 = vmatpush1.msra.mxu0 0.0
      %2202 = vmatprep.subr.mxu0 0.0
      %2203 = vmatpush1.msra.mxu0 0.0
      %2204 = vmatprep.subr.mxu0 0.0
      %2205 = vmatpush1.msra.mxu0 0.0
      %2206 = vmatprep.subr.mxu0 0.0
      %2207 = vmatpush1.msra.mxu0 0.0
      %2208 = vmatprep.subr.mxu0 0.0
      %2209 = vmatpush1.msra.mxu0 0.0
      %2210 = vmatprep.subr.mxu0 0.0
      %2211 = vmatpush1.msra.mxu0 0.0
      %2212 = vmatprep.subr.mxu0 0.0
      %2213 = vmatpush1.msra.mxu0 0.0
      %2214 = vmatprep.subr.mxu0 0.0
      %2215 = vmatpush1.msra.mxu0 0.0
      %2216 = vmatprep.subr.mxu0 0.0
      %2217 = vmatpush1.msra.mxu0 0.0
      %2218 = vmatprep.subr.mxu0 0.0
      %2219 = vmatpush1.msra.mxu0 0.0
      %2220 = vmatprep.subr.mxu0 0.0
      %2221 = vmatpush1.msra.mxu0 0.0
      %2222 = vmatprep.subr.mxu0 0.0
      %2223 = vmatpush1.msra.mxu0 0.0
      %2224 = vmatprep.subr.mxu0 0.0
      %2225 = vmatpush1.msra.mxu0 0.0
      %2226 = vmatprep.subr.mxu0 0.0
      %2227 = vmatpush1.msra.mxu0 0.0
      %2228 = vmatprep.subr.mxu0 0.0
      %2229 = vmatpush1.msra.mxu0 0.0
      %2230 = vmatprep.subr.mxu0 0.0
      %2231 = vmatpush1.msra.mxu0 0.0
      %2232 = vmatprep.subr.mxu0 0.0
      %2233 = vmatpush1.msra.mxu0 0.0
      %2234 = vmatprep.subr.mxu0 0.0
      %2235 = vmatpush1.msra.mxu0 0.0
      %2236 = vmatprep.subr.mxu0 0.0
      %2237 = vmatpush1.msra.mxu0 0.0
      %2238 = vmatprep.subr.mxu0 0.0
      %2239 = vmatpush1.msra.mxu0 0.0
      %2240 = vmatprep.subr.mxu0 0.0
      %2241 = vmatpush1.msra.mxu0 0.0
      %2242 = vmatprep.subr.mxu0 0.0
      %2243 = vmatpush1.msra.mxu0 0.0
      %2244 = vmatprep.mubr.f32.mxu0 0.0
      %2245 = vmatmul.mubr.f32.gmra.mrb[0].mxu0 %v384
      %v2246 = vpop.f32.mrb[0].mxu0
      %v2247 = vadd.f32 %v2178, %v2246
      %v2248 = vpop.f32.mrb[0].mxu0
      %2249 = vdwg.mxu0
      %v2250 = vadd.f32 %v1688, %v1767
      %v2251 = vxor.u32 %v2250, 2147483648
      %v2252 = vmul.f32 %v2251, 1.442695
      %v2253 = vpow.pop %v2252
      %v2254 = vadd.f32 %v2253, 1.0
      %v2255 = vrcp.pop %v2254
      %v2256 = vmul.f32 1.0, %v2255
      %v2257 = vadd.f32 %v1926, %v2007
      %v2258 = vxor.u32 %v2257, 2147483648
      %v2259 = vmul.f32 %v2258, 1.442695
      %v2260 = vpow.pop %v2259
      %v2261 = vadd.f32 %v2260, 1.0
      %v2262 = vrcp.pop %v2261
      %v2263 = vmul.f32 1.0, %v2262
      %v2264 = vmul.f32 %v2256, %v2247
      %v2265 = vadd.f32 %v2166, %v2264
      %v2266 = vtanh.pop %v2265
      %v2267 = vsub.f32 1.0, %v2263
      %v2268 = vmul.f32 %v2267, %v2266
      %v2269 = vmul.f32 %v2263, %v236
      %v2270 = vadd.f32 %v2268, %v2269
      %2271 = vst.msk [vmem:[#allocation27] sm:$0xff] %vm249, %v2270
      %2272 = vst.msk [vmem:[#allocation2] sm:$0xff] %vm249, %v2270
      %2273 = vrot.lane.b32.xlu0 %v235, 32
      %v2274 = vpop.permute.xlu0 %2273
      %vm2276 = vcmask 392448
      %2277 = vst.msk [vmem:[#allocation2] sm:$0xff] %vm2276, %v2274
      %2278 = vrot.lane.b32.xlu0 %v1534, 48
      %v2279 = vpop.permute.xlu0 %2278
      %vm2281 = vcmask 654720
      %2282 = vst.msk [vmem:[#allocation2] sm:$0xff] %vm2281, %v2279
    $region117: #{tpu_custom_call.1} parent=1 // pred_fallthru
      _
    %v2283 = vld [vmem:[#allocation2] sm:$0xff]
    %v2284 = vld [vmem:[#allocation23] sm:$0xff]
    %v2285 = vld [vmem:[#allocation23 + $0x8] sm:$0xff]
    %v2286 = vld [vmem:[#allocation23 + $0x10] sm:$0xff]
    %v2287 = vld [vmem:[#allocation23 + $0x18] sm:$0xff]
    %v2288 = vld [vmem:[#allocation23 + $0x20] sm:$0xff]
    %v2289 = vld [vmem:[#allocation23 + $0x28] sm:$0xff]
    %v2290 = vld [vmem:[#allocation23 + $0x30] sm:$0xff]
    %v2291 = vld [vmem:[#allocation23 + $0x38] sm:$0xff]
    %v2292 = vld [vmem:[#allocation23 + $0x40] sm:$0xff]
    %v2293 = vld [vmem:[#allocation23 + $0x48] sm:$0xff]
    %v2294 = vld [vmem:[#allocation24] sm:$0x1]
    %v2296 = vlaneseq
    %v2297 = vshrl.u32 %v2296, 7
    %v2298 = vsub.s32 0, %v2297
    %v2299 = vrot.slane %v2294, %v2298
    %vm2301 = vcmask 654336
    %v2303 = vsel %vm2301, %v2283, 0
    %2305 = vmatprep.subr.mxu0 0.0
    %2306 = vmatpush1.msra.mxu0 %v2284
    %2307 = vmatprep.subr.mxu0 0.0
    %2308 = vmatpush1.msra.mxu0 %v2285
    %2309 = vmatprep.subr.mxu0 0.0
    %2310 = vmatpush1.msra.mxu0 %v2286
    %2311 = vmatprep.subr.mxu0 0.0
    %2312 = vmatpush1.msra.mxu0 %v2287
    %2313 = vmatprep.subr.mxu0 0.0
    %2314 = vmatpush1.msra.mxu0 %v2288
    %2315 = vmatprep.subr.mxu0 0.0
    %2316 = vmatpush1.msra.mxu0 %v2289
    %2317 = vmatprep.subr.mxu0 0.0
    %2318 = vmatpush1.msra.mxu0 %v2290
    %2319 = vmatprep.subr.mxu0 0.0
    %2320 = vmatpush1.msra.mxu0 %v2291
    %2321 = vmatprep.subr.mxu0 0.0
    %2322 = vmatpush1.msra.mxu0 %v2292
    %2323 = vmatprep.subr.mxu0 0.0
    %2324 = vmatpush1.msra.mxu0 %v2293
    %2325 = vmatprep.subr.mxu0 0.0
    %2326 = vmatpush1.msra.mxu0 0.0
    %2327 = vmatprep.subr.mxu0 0.0
    %2328 = vmatpush1.msra.mxu0 0.0
    %2329 = vmatprep.subr.mxu0 0.0
    %2330 = vmatpush1.msra.mxu0 0.0
    %2331 = vmatprep.subr.mxu0 0.0
    %2332 = vmatpush1.msra.mxu0 0.0
    %2333 = vmatprep.subr.mxu0 0.0
    %2334 = vmatpush1.msra.mxu0 0.0
    %2335 = vmatprep.subr.mxu0 0.0
    %2336 = vmatpush1.msra.mxu0 0.0
    %2337 = vmatprep.subr.mxu0 0.0
    %2338 = vmatpush1.msra.mxu0 0.0
    %2339 = vmatprep.subr.mxu0 0.0
    %2340 = vmatpush1.msra.mxu0 0.0
    %2341 = vmatprep.subr.mxu0 0.0
    %2342 = vmatpush1.msra.mxu0 0.0
    %2343 = vmatprep.subr.mxu0 0.0
    %2344 = vmatpush1.msra.mxu0 0.0
    %2345 = vmatprep.subr.mxu0 0.0
    %2346 = vmatpush1.msra.mxu0 0.0
    %2347 = vmatprep.subr.mxu0 0.0
    %2348 = vmatpush1.msra.mxu0 0.0
    %2349 = vmatprep.subr.mxu0 0.0
    %2350 = vmatpush1.msra.mxu0 0.0
    %2351 = vmatprep.subr.mxu0 0.0
    %2352 = vmatpush1.msra.mxu0 0.0
    %2353 = vmatprep.subr.mxu0 0.0
    %2354 = vmatpush1.msra.mxu0 0.0
    %2355 = vmatprep.subr.mxu0 0.0
    %2356 = vmatpush1.msra.mxu0 0.0
    %2357 = vmatprep.subr.mxu0 0.0
    %2358 = vmatpush1.msra.mxu0 0.0
    %2359 = vmatprep.subr.mxu0 0.0
    %2360 = vmatpush1.msra.mxu0 0.0
    %2361 = vmatprep.subr.mxu0 0.0
    %2362 = vmatpush1.msra.mxu0 0.0
    %2363 = vmatprep.subr.mxu0 0.0
    %2364 = vmatpush1.msra.mxu0 0.0
    %2365 = vmatprep.subr.mxu0 0.0
    %2366 = vmatpush1.msra.mxu0 0.0
    %2367 = vmatprep.subr.mxu0 0.0
    %2368 = vmatpush1.msra.mxu0 0.0
    %2369 = vmatprep.mubr.f32.mxu0 0.0
    %2370 = vmatmul.mubr.f32.gmra.mrb[0].mxu0 %v2303
    %v2371 = vpop.f32.mrb[0].mxu0
    %v2372 = vadd.f32 %v2299, %v2371
    %v2373 = vpop.f32.mrb[0].mxu0
    %2374 = vdwg.mxu0
    %2375 = vst [vmem:[#allocation26] sm:$0xff] %v2372
    // Predicated region
    $region118: #{tpu_custom_call.1} parent=1 // pred_check
      _
    $region119: #{tpu_custom_call.1} parent=1 // pred_check_branch
      %2377 = sbr.rel (0) target = $region121
    $region120: #{tpu_custom_call.1} parent=1 // pred_region
      %s2379 = ssub.s32 128, 128
      %2380 = vsyncadd [#allocation5], %s2379
      %s2382 = sshll.u32 [#allocation26], 4
      %s2383 = int_to_ptr.vmem [resolvable:$true] %s2382
      %2385 = dma.vmem_to_hbm [thread:$0]  %s2383, 128, %s14, [#allocation5]
    $region121: #{tpu_custom_call.1} parent=1 // pred_fallthru
      _
    // Predicated region
    $region122: #{tpu_custom_call.1} parent=1 // pred_check
      _
    $region123: #{tpu_custom_call.1} parent=1 // pred_check_branch
      %2387 = sbr.rel (0) target = $region125
    $region124: #{tpu_custom_call.1} parent=1 // pred_region
      %s2389 = ssub.s32 128, 128
      %2390 = vsyncadd [#allocation28], %s2389
      %s2392 = sshll.u32 [#allocation27], 4
      %s2393 = int_to_ptr.vmem [resolvable:$true] %s2392
      %2395 = dma.vmem_to_hbm [thread:$0]  %s2393, 128, %s15, [#allocation28]
    $region125: #{tpu_custom_call.1} parent=1 // pred_fallthru
      _
    // Predicated region
    $region126: #{tpu_custom_call.1} parent=1 // pred_check
      _
    $region127: #{tpu_custom_call.1} parent=1 // pred_check_branch
      %2397 = sbr.rel (0) target = $region129
    $region128: #{tpu_custom_call.1} parent=1 // pred_region
      %2398 = dma.done [#allocation5], 128
    $region129: #{tpu_custom_call.1} parent=1 // pred_fallthru
      _
    // Predicated region
    $region130: #{tpu_custom_call.1} parent=1 // pred_check
      _
    $region131: #{tpu_custom_call.1} parent=1 // pred_check_branch
      %2400 = sbr.rel (0) target = $region133
    $region132: #{tpu_custom_call.1} parent=1 // pred_region
      %2401 = dma.done [#allocation28], 128
    $region133: #{tpu_custom_call.1} parent=1 // pred_fallthru
      _
    %2402 = vsyncpa [#allocation4], 1
    %2403 = vsyncpa [#allocation7], 1
    %2404 = vsyncpa [#allocation10], 1
    %2405 = vsyncpa [#allocation13], 1
    %2406 = vsyncpa [#allocation16], 1
    %2407 = vsyncpa [#allocation19], 1
    %2408 = vsyncpa [#allocation22], 1
    %2409 = vsyncpa [#allocation25], 1
    %2410 = vsyncpa [#allocation5], 1
    %2411 = vsyncpa [#allocation28], 1

</llo_original>
